<compile_context>
chip_gen: v5e
topology: v5e:2x2
jax: 0.10.0
libtpu: 0.0.40
codegen_flags: <defaults>
</compile_context>

<pallas_src>
import math

import jax
import jax.numpy as jnp
from jax.experimental import pallas as pl
from jax.experimental.pallas import tpu as pltpu


def _round_up(n, m):
    return ((n + m - 1) // m) * m


# ----------------------- in-kernel building blocks -------------------------

def _conv_relu(x, w2, bias_col, *, k, stride):
    """ReLU(Conv2d(kernel=(k,1), pad=((k-1)//2,0), stride=(s,1))) on one sample.

    x:        (T_in, C_in, VP)   activations, keypoints lane-dense (zero padded)
    w2:       (C_out, k*C_in)    flattened weight: w2[o, j*C_in+ci] = W[o, ci, j]
    bias_col: (C_out, 1)         f32
    returns   (T_out, C_out, VP) in x.dtype
    """
    t_in, c_in, vp = x.shape
    c_out = w2.shape[0]
    pad = (k - 1) // 2
    if pad > 0:
        z = jnp.zeros((pad, c_in, vp), x.dtype)
        x_pad = jnp.concatenate([z, x, z], axis=0)                  # (T_in+2p, C_in, VP)
    else:
        x_pad = x
    # k time-shifted slabs concatenated along the channel (sublane) axis.
    xcol = jnp.concatenate([x_pad[j:j + t_in] for j in range(k)], axis=1)  # (T_in, kC, VP)
    if stride > 1:
        g = (t_in + stride - 1) // stride                           # conv output length
        extra = g * stride - t_in
        if extra > 0:
            zr = jnp.zeros((extra, k * c_in, vp), xcol.dtype)
            xcol = jnp.concatenate([xcol, zr], axis=0)
        xcol = xcol.reshape(g, stride, k * c_in, vp)[:, 0]          # rows 0, s, 2s, ...
    t_out = xcol.shape[0]
    # Batched MXU matmul (leading batch on both operands).
    w_b = jnp.broadcast_to(w2[None], (t_out, c_out, k * c_in))
    y = jnp.einsum('toj,tjv->tov', w_b, xcol,
                   preferred_element_type=jnp.float32)              # (T_out, C_out, VP) f32
    y = jnp.maximum(y + bias_col[None].astype(jnp.float32), 0.0)
    return y.astype(x.dtype)


def _reduce_window_A(a3, stride):
    """Chunked mean over time (matches TGCN_v2._reduce_window_size)."""
    t = a3.shape[0]
    if t % stride == 0:
        g = t // stride
        a4 = a3.reshape(g, stride, a3.shape[1], a3.shape[2])
        acc = a4[:, 0]
        for i in range(1, stride):
            acc = acc + a4[:, i]
        return acc * (1.0 / stride)
    # ragged last chunk (not exercised at the toy shapes)
    chunks = [jnp.mean(a3[i:i + stride], axis=0, keepdims=True)
              for i in range(0, t, stride)]
    return jnp.concatenate(chunks, axis=0)


def _make_fused_kernel(cfg):
    T, V, C, VP = cfg["T"], cfg["V"], cfg["C"], cfg["VP"]
    k, stride0 = cfg["kernel_size"], cfg["stride0"]
    layer_strides = cfg["layer_strides"]
    delta = cfg["delta"]
    n_conv = 1 + len(layer_strides)
    inv2d2 = 1.0 / (2.0 * delta * delta)
    cdt = jnp.bfloat16                    # MXU / inter-layer activation dtype

    def kernel(x_ref, scale_ref, shift_ref, *refs):
        conv_w = [refs[2 * i] for i in range(n_conv)]
        conv_b = [refs[2 * i + 1] for i in range(n_conv)]
        out_ref = refs[2 * n_conv]

        # ---- this sample, raw input (T, V, C) and (T, C, V) ----
        x_raw = x_ref[0].astype(jnp.float32)                        # (T, V, C)
        x_cv = jnp.transpose(x_raw, (0, 2, 1))                      # (T, C, V) single relayout

        # ---- adjacency A[t] = exp(-||xi-xj|| / (2*delta^2)) on the RAW input ----
        # (reference uses the unsquared Euclidean cdist and an unnormalized A)
        gram = jnp.einsum('tic,tjc->tij', x_raw, x_raw,
                          preferred_element_type=jnp.float32)       # (T, V, V)
        sq_row = jnp.sum(x_raw * x_raw, axis=-1, keepdims=True)     # (T, V, 1)
        sq_col = jnp.sum(x_cv * x_cv, axis=1, keepdims=True)        # (T, 1, V)
        d2 = jnp.maximum(sq_row + sq_col - 2.0 * gram, 0.0)
        a3 = jnp.exp(-jnp.sqrt(d2) * inv2d2)                        # (T, V, V)
        if VP > V:
            a3 = jnp.concatenate(
                [a3, jnp.zeros((T, V, VP - V), jnp.float32)], axis=2)
            a3 = jnp.concatenate(
                [a3, jnp.zeros((T, VP - V, VP), jnp.float32)], axis=1)
        a3 = a3.astype(cdt)                                         # (T, VP, VP)

        # ---- data_bn affine (precomputed, training-mode batch stats) ----
        if VP > V:
            x_cv = jnp.concatenate(
                [x_cv, jnp.zeros((T, C, VP - V), jnp.float32)], axis=2)
        xc = x_cv * scale_ref[...][None] + shift_ref[...][None]     # (T, C, VP) f32
        xc = xc.astype(cdt)

        # ---- gtcn0 ----
        xc = _conv_relu(xc, conv_w[0][...], conv_b[0][...],
                        k=k, stride=stride0)                        # (T0, C0, VP)

        # ---- GCN layers: [window-mean A] -> X@A -> temporal conv + ReLU ----
        prev_s = stride0
        for li, s in enumerate(layer_strides):
            if prev_s != 1:
                a3 = _reduce_window_A(a3, prev_s)
            ax = jnp.einsum('tcv,tvw->tcw', xc, a3,
                            preferred_element_type=jnp.float32).astype(cdt)
            xc = _conv_relu(ax, conv_w[li + 1][...], conv_b[li + 1][...],
                            k=k, stride=s)
            prev_s = s

        # ---- masked mean pool over (time, real keypoints) ----
        t_last = xc.shape[0]
        x_real = xc[:, :, :V].astype(jnp.float32)                   # (T_last, C_last, V)
        s_t = jnp.sum(x_real, axis=0)                               # (C_last, V)
        s_tv = jnp.sum(s_t, axis=1, keepdims=True)                  # (C_last, 1)
        pooled = s_tv * (1.0 / (t_last * V))
        out_ref[0] = jnp.transpose(pooled, (1, 0))                  # (1, C_last)

    return kernel


# ------------------------------- wrapper ------------------------------------

def tgcn_v2_forward(params, X, in_out_channels, *, kernel_size=3, stride0=1,
                    delta=0.5, eps=1e-5):
    """X: (B, T, V, C) -> logits (B, num_class)."""
    B, T, V, C = X.shape
    assert kernel_size % 2 == 1, "odd temporal kernel expected ('same' padding)"
    for i in range(1, len(in_out_channels)):
        assert in_out_channels[i][0] == in_out_channels[i - 1][1]

    VP = _round_up(V, 128)
    layer_strides = [s for (_, _, s) in in_out_channels]
    cfg = dict(T=T, V=V, C=C, VP=VP, kernel_size=kernel_size, stride0=stride0,
               layer_strides=layer_strides, delta=delta)
    kernel = _make_fused_kernel(cfg)

    # data_bn (training-mode batch statistics, biased variance) hoisted to XLA.
    Xf = X.astype(jnp.float32)
    gamma_vc = params["bn_gamma"].reshape(V, C)
    beta_vc = params["bn_beta"].reshape(V, C)
    mean_vc = jnp.mean(Xf, axis=(0, 1))                             # (V, C)
    var_vc = jnp.mean(jnp.square(Xf - mean_vc[None, None]), axis=(0, 1))
    scale_vc = gamma_vc * jax.lax.rsqrt(var_vc + eps)
    shift_vc = beta_vc - mean_vc * scale_vc
    scale_cv = jnp.pad(scale_vc.T, ((0, 0), (0, VP - V)))           # (C, VP), zero pad
    shift_cv = jnp.pad(shift_vc.T, ((0, 0), (0, VP - V)))

    # Flatten conv weights for the in-kernel matmul: w2[o, j*C_in+ci] = W[o, ci, j]
    def flat_w(w):
        cout, cin, kk = w.shape
        return jnp.transpose(w, (0, 2, 1)).reshape(cout, kk * cin).astype(jnp.bfloat16)

    conv_params = [params["gtcn0"]] + params["layers"]
    conv_args = []
    for w, bias in conv_params:
        conv_args.append(flat_w(w))
        conv_args.append(bias.reshape(-1, 1).astype(jnp.float32))

    args = [Xf, scale_cv, shift_cv, *conv_args]

    in_specs = [pl.BlockSpec((1, T, V, C), lambda b: (b, 0, 0, 0))]
    for a in args[1:]:
        in_specs.append(pl.BlockSpec(a.shape, lambda b, _nd=a.ndim: (0,) * _nd))

    c_last = in_out_channels[-1][1]
    out_specs = pl.BlockSpec((1, 1, c_last), lambda b: (b, 0, 0))

    # advisory cost estimate so XLA can schedule around the custom call
    kk = kernel_size
    conv_chain = [(C, in_out_channels[0][0], stride0)] + list(in_out_channels)
    flops = 2 * T * V * V * C                                       # cdist gram
    t_cur = T
    for idx, (ci, co, s) in enumerate(conv_chain):
        if idx >= 1:
            flops += 2 * ci * t_cur * VP * VP                       # graph aggregation
        t_out = (t_cur - 1) // s + 1
        flops += 2 * co * kk * ci * t_out * VP                      # temporal conv
        t_cur = t_out
    flops *= B
    transcendentals = B * T * V * V * 2                             # exp + sqrt
    bytes_accessed = sum(int(a.size) * a.dtype.itemsize for a in args) + 4 * B * c_last
    cost = pl.CostEstimate(flops=int(flops), transcendentals=int(transcendentals),
                           bytes_accessed=int(bytes_accessed))

    pooled = pl.pallas_call(
        kernel,
        out_shape=jax.ShapeDtypeStruct((B, 1, c_last), jnp.float32),
        grid=(B,),
        in_specs=in_specs,
        out_specs=out_specs,
        compiler_params=pltpu.CompilerParams(
            dimension_semantics=("parallel",),
            vmem_limit_bytes=48 * 1024 * 1024),
        cost_estimate=cost,
    )(*args).reshape(B, c_last)

    # tiny classifier head over the whole batch in plain XLA (lane-dense, full MXU)
    h = pooled @ params["fc1_w"] + params["fc1_b"]
    logits = h @ params["fc2_w"] + params["fc2_b"]
    return logits


# ------------------------------ params init ---------------------------------

def init_tgcn_v2_params(key, in_channel, num_keypoints, num_class,
                        in_out_channels, kernel_size):
    params = {}
    n_conv = 1 + len(in_out_channels)
    keys = iter(jax.random.split(key, 2 * n_conv + 4))

    def conv_param(cout, cin):
        scale = math.sqrt(2.0 / (cin * kernel_size))
        w = scale * jax.random.normal(next(keys), (cout, cin, kernel_size), jnp.float32)
        b = 0.01 * jax.random.normal(next(keys), (cout,), jnp.float32)
        return w, b

    out_c0 = in_out_channels[0][0]
    params["gtcn0"] = conv_param(out_c0, in_channel)
    params["layers"] = [conv_param(cout, cin) for (cin, cout, _) in in_out_channels]

    # data_bn = BatchNorm1d(in_channel * num_keypoints), fresh affine params
    params["bn_gamma"] = jnp.ones((in_channel * num_keypoints,), jnp.float32)
    params["bn_beta"] = jnp.zeros((in_channel * num_keypoints,), jnp.float32)

    gtcn_out_c = in_out_channels[-1][1]
    assert num_class < 100  # two-Linear classifier head branch of the reference
    hidden = 256
    params["fc1_w"] = (1.0 / math.sqrt(gtcn_out_c)) * jax.random.normal(
        next(keys), (gtcn_out_c, hidden), jnp.float32)
    params["fc1_b"] = 0.01 * jax.random.normal(next(keys), (hidden,), jnp.float32)
    params["fc2_w"] = (1.0 / math.sqrt(hidden)) * jax.random.normal(
        next(keys), (hidden, num_class), jnp.float32)
    params["fc2_b"] = 0.01 * jax.random.normal(next(keys), (num_class,), jnp.float32)
    return params


# --------------------------------- main --------------------------------------

if __name__ == "__main__":
    B, T, V, C = 2, 8, 6, 4            # batch, window, keypoints, features
    num_class = 10
    kernel_size = 3
    in_out_channels = [(8, 8, 1), (8, 16, 2), (16, 8, 1)]  # small synthetic config

    key = jax.random.PRNGKey(0)
    kx, kp = jax.random.split(key)
    X = jax.random.normal(kx, (B, T, V, C), jnp.float32)
    params = init_tgcn_v2_params(kp, C, V, num_class, in_out_channels, kernel_size)

    fwd = jax.jit(lambda p, x: tgcn_v2_forward(p, x, in_out_channels,
                                               kernel_size=kernel_size, stride0=1))
    out = fwd(params, X)
    out = jax.block_until_ready(out)
    assert out.shape == (B, num_class), out.shape
    assert bool(jnp.all(jnp.isfinite(out)))
    print("KERNEL_OK")
</pallas_src>

<mosaic_0001>
module attributes {stable_mosaic.version = 11 : i64} {
  func.func @kernel(%arg0: i32, %arg1: memref<1x8x6x4xf32, #tpu.memory_space<vmem>>, %arg2: memref<4x128xf32, #tpu.memory_space<vmem>>, %arg3: memref<4x128xf32, #tpu.memory_space<vmem>>, %arg4: memref<8x12xbf16, #tpu.memory_space<vmem>>, %arg5: memref<8x1xf32, #tpu.memory_space<vmem>>, %arg6: memref<8x24xbf16, #tpu.memory_space<vmem>>, %arg7: memref<8x1xf32, #tpu.memory_space<vmem>>, %arg8: memref<16x24xbf16, #tpu.memory_space<vmem>>, %arg9: memref<16x1xf32, #tpu.memory_space<vmem>>, %arg10: memref<8x48xbf16, #tpu.memory_space<vmem>>, %arg11: memref<8x1xf32, #tpu.memory_space<vmem>>, %arg12: memref<1x1x8xf32, #tpu.memory_space<vmem>>) attributes {dimension_semantics = [#tpu.dimension_semantics<parallel>], iteration_bounds = array<i64: 2>, scalar_prefetch = 0 : i64, scratch_operands = 0 : i64, tpu.core_type = #tpu.core_type<tc>, window_params = [{transform_indices = @transform_0, window_bounds = array<i64: 1, 8, 6, 4>}, {pipeline_mode = #tpu.pipeline_mode<synchronous>, transform_indices = @transform_1, window_bounds = array<i64: 4, 128>}, {pipeline_mode = #tpu.pipeline_mode<synchronous>, transform_indices = @transform_2, window_bounds = array<i64: 4, 128>}, {pipeline_mode = #tpu.pipeline_mode<synchronous>, transform_indices = @transform_3, window_bounds = array<i64: 8, 12>}, {pipeline_mode = #tpu.pipeline_mode<synchronous>, transform_indices = @transform_4, window_bounds = array<i64: 8, 1>}, {pipeline_mode = #tpu.pipeline_mode<synchronous>, transform_indices = @transform_5, window_bounds = array<i64: 8, 24>}, {pipeline_mode = #tpu.pipeline_mode<synchronous>, transform_indices = @transform_6, window_bounds = array<i64: 8, 1>}, {pipeline_mode = #tpu.pipeline_mode<synchronous>, transform_indices = @transform_7, window_bounds = array<i64: 16, 24>}, {pipeline_mode = #tpu.pipeline_mode<synchronous>, transform_indices = @transform_8, window_bounds = array<i64: 16, 1>}, {pipeline_mode = #tpu.pipeline_mode<synchronous>, transform_indices = @transform_9, window_bounds = array<i64: 8, 48>}, {pipeline_mode = #tpu.pipeline_mode<synchronous>, transform_indices = @transform_10, window_bounds = array<i64: 8, 1>}, {transform_indices = @transform_11, window_bounds = array<i64: 1, 1, 8>}]} {
    %c0 = arith.constant 0 : index
    %c0_0 = arith.constant 0 : index
    %c0_1 = arith.constant 0 : index
    %c0_2 = arith.constant 0 : index
    %0 = vector.load %arg1[%c0, %c0_0, %c0_1, %c0_2] : memref<1x8x6x4xf32, #tpu.memory_space<vmem>>, vector<1x8x6x4xf32>
    %1 = vector.shape_cast %0 : vector<1x8x6x4xf32> to vector<8x6x4xf32>
    %2 = tpu.transpose %1, [0, 2, 1] : vector<8x6x4xf32> -> vector<8x4x6xf32>
    "tpu.trace_start"() <{level = 10 : i32, message = "tic,tjc->tij"}> : () -> ()
    %cst = arith.constant dense<0.000000e+00> : vector<8x6x6xf32>
    %3 = tpu.matmul %1, %1, %cst {dimension_numbers = #tpu.dot_dimension_numbers<[2], [2], [1], [1], [0, 0, 0, 1, 1, 1], [0], [0]>} : vector<8x6x4xf32>, vector<8x6x4xf32>, vector<8x6x6xf32> -> vector<8x6x6xf32>
    "tpu.trace_stop"() : () -> ()
    %4 = arith.mulf %1, %1 : vector<8x6x4xf32>
    %cst_3 = arith.constant dense<0.000000e+00> : vector<8x6xf32>
    %5 = vector.multi_reduction <add>, %4, %cst_3 [2] : vector<8x6x4xf32> to vector<8x6xf32>
    %6 = vector.shape_cast %5 : vector<8x6xf32> to vector<8x6x1xf32>
    %7 = arith.mulf %2, %2 : vector<8x4x6xf32>
    %cst_4 = arith.constant dense<0.000000e+00> : vector<8x6xf32>
    %8 = vector.multi_reduction <add>, %7, %cst_4 [1] : vector<8x4x6xf32> to vector<8x6xf32>
    %9 = vector.shape_cast %8 : vector<8x6xf32> to vector<8x1x6xf32>
    %10 = vector.broadcast %6 : vector<8x6x1xf32> to vector<8x6x6xf32>
    %11 = vector.broadcast %9 : vector<8x1x6xf32> to vector<8x6x6xf32>
    %12 = arith.addf %10, %11 : vector<8x6x6xf32>
    %cst_5 = arith.constant 2.000000e+00 : f32
    %13 = vector.broadcast %cst_5 : f32 to vector<8x6x6xf32>
    %14 = arith.mulf %13, %3 : vector<8x6x6xf32>
    %15 = arith.subf %12, %14 : vector<8x6x6xf32>
    %cst_6 = arith.constant 0.000000e+00 : f32
    %16 = vector.broadcast %cst_6 : f32 to vector<8x6x6xf32>
    %17 = arith.maximumf %15, %16 : vector<8x6x6xf32>
    %18 = math.sqrt %17 : vector<8x6x6xf32>
    %cst_7 = arith.constant 0.000000e+00 : f32
    %19 = vector.broadcast %cst_7 : f32 to vector<8x6x6xf32>
    %20 = arith.subf %19, %18 : vector<8x6x6xf32>
    %cst_8 = arith.constant 2.000000e+00 : f32
    %21 = vector.broadcast %cst_8 : f32 to vector<8x6x6xf32>
    %22 = arith.mulf %20, %21 : vector<8x6x6xf32>
    %23 = math.exp %22 : vector<8x6x6xf32>
    %cst_9 = arith.constant 0.000000e+00 : f32
    %24 = vector.broadcast %cst_9 : f32 to vector<8x6x122xf32>
    %25 = tpu.concatenate %23, %24 in 2 : vector<8x6x6xf32>, vector<8x6x122xf32> -> vector<8x6x128xf32>
    %cst_10 = arith.constant 0.000000e+00 : f32
    %26 = vector.broadcast %cst_10 : f32 to vector<8x122x128xf32>
    %27 = tpu.concatenate %25, %26 in 1 : vector<8x6x128xf32>, vector<8x122x128xf32> -> vector<8x128x128xf32>
    %28 = arith.truncf %27 : vector<8x128x128xf32> to vector<8x128x128xbf16>
    %cst_11 = arith.constant 0.000000e+00 : f32
    %29 = vector.broadcast %cst_11 : f32 to vector<8x4x122xf32>
    %30 = tpu.concatenate %2, %29 in 2 : vector<8x4x6xf32>, vector<8x4x122xf32> -> vector<8x4x128xf32>
    %c0_12 = arith.constant 0 : index
    %c0_13 = arith.constant 0 : index
    %31 = vector.load %arg2[%c0_12, %c0_13] : memref<4x128xf32, #tpu.memory_space<vmem>>, vector<4x128xf32>
    %32 = vector.shape_cast %31 : vector<4x128xf32> to vector<1x4x128xf32>
    %33 = vector.broadcast %32 : vector<1x4x128xf32> to vector<8x4x128xf32>
    %34 = arith.mulf %30, %33 : vector<8x4x128xf32>
    %c0_14 = arith.constant 0 : index
    %c0_15 = arith.constant 0 : index
    %35 = vector.load %arg3[%c0_14, %c0_15] : memref<4x128xf32, #tpu.memory_space<vmem>>, vector<4x128xf32>
    %36 = vector.shape_cast %35 : vector<4x128xf32> to vector<1x4x128xf32>
    %37 = vector.broadcast %36 : vector<1x4x128xf32> to vector<8x4x128xf32>
    %38 = arith.addf %34, %37 : vector<8x4x128xf32>
    %39 = arith.truncf %38 : vector<8x4x128xf32> to vector<8x4x128xbf16>
    %c0_16 = arith.constant 0 : index
    %c0_17 = arith.constant 0 : index
    %40 = vector.load %arg4[%c0_16, %c0_17] : memref<8x12xbf16, #tpu.memory_space<vmem>>, vector<8x12xbf16>
    %c0_18 = arith.constant 0 : index
    %c0_19 = arith.constant 0 : index
    %41 = vector.load %arg5[%c0_18, %c0_19] : memref<8x1xf32, #tpu.memory_space<vmem>>, vector<8x1xf32>
    %cst_20 = arith.constant 0.000000e+00 : bf16
    %42 = vector.broadcast %cst_20 : bf16 to vector<1x4x128xbf16>
    %43 = tpu.concatenate %42, %39, %42 in 0 : vector<1x4x128xbf16>, vector<8x4x128xbf16>, vector<1x4x128xbf16> -> vector<10x4x128xbf16>
    %44 = vector.extract_strided_slice %43 {offsets = [0, 0, 0], sizes = [8, 4, 128], strides = [1, 1, 1]} : vector<10x4x128xbf16> to vector<8x4x128xbf16>
    %45 = vector.extract_strided_slice %43 {offsets = [1, 0, 0], sizes = [8, 4, 128], strides = [1, 1, 1]} : vector<10x4x128xbf16> to vector<8x4x128xbf16>
    %46 = vector.extract_strided_slice %43 {offsets = [2, 0, 0], sizes = [8, 4, 128], strides = [1, 1, 1]} : vector<10x4x128xbf16> to vector<8x4x128xbf16>
    %47 = tpu.concatenate %44, %45, %46 in 1 : vector<8x4x128xbf16>, vector<8x4x128xbf16>, vector<8x4x128xbf16> -> vector<8x12x128xbf16>
    %48 = vector.shape_cast %40 : vector<8x12xbf16> to vector<1x8x12xbf16>
    %49 = vector.shape_cast %48 : vector<1x8x12xbf16> to vector<1x8x12xbf16>
    %50 = vector.broadcast %49 : vector<1x8x12xbf16> to vector<8x8x12xbf16>
    "tpu.trace_start"() <{level = 10 : i32, message = "toj,tjv->tov"}> : () -> ()
    %cst_21 = arith.constant dense<0.000000e+00> : vector<8x8x128xf32>
    %51 = tpu.matmul %50, %47, %cst_21 {dimension_numbers = #tpu.dot_dimension_numbers<[2], [1], [1], [2], [0, 0, 0, 1, 1, 2], [0], [0]>} : vector<8x8x12xbf16>, vector<8x12x128xbf16>, vector<8x8x128xf32> -> vector<8x8x128xf32>
    "tpu.trace_stop"() : () -> ()
    %52 = vector.shape_cast %41 : vector<8x1xf32> to vector<1x8x1xf32>
    %53 = vector.broadcast %52 : vector<1x8x1xf32> to vector<8x8x128xf32>
    %54 = arith.addf %51, %53 : vector<8x8x128xf32>
    %cst_22 = arith.constant 0.000000e+00 : f32
    %55 = vector.broadcast %cst_22 : f32 to vector<8x8x128xf32>
    %56 = arith.maximumf %54, %55 : vector<8x8x128xf32>
    %57 = arith.truncf %56 : vector<8x8x128xf32> to vector<8x8x128xbf16>
    "tpu.trace_start"() <{level = 10 : i32, message = "tcv,tvw->tcw"}> : () -> ()
    %cst_23 = arith.constant dense<0.000000e+00> : vector<8x8x128xf32>
    %58 = tpu.matmul %57, %28, %cst_23 {dimension_numbers = #tpu.dot_dimension_numbers<[2], [1], [1], [2], [0, 0, 0, 1, 1, 2], [0], [0]>} : vector<8x8x128xbf16>, vector<8x128x128xbf16>, vector<8x8x128xf32> -> vector<8x8x128xf32>
    "tpu.trace_stop"() : () -> ()
    %59 = arith.truncf %58 : vector<8x8x128xf32> to vector<8x8x128xbf16>
    %c0_24 = arith.constant 0 : index
    %c0_25 = arith.constant 0 : index
    %60 = vector.load %arg6[%c0_24, %c0_25] : memref<8x24xbf16, #tpu.memory_space<vmem>>, vector<8x24xbf16>
    %c0_26 = arith.constant 0 : index
    %c0_27 = arith.constant 0 : index
    %61 = vector.load %arg7[%c0_26, %c0_27] : memref<8x1xf32, #tpu.memory_space<vmem>>, vector<8x1xf32>
    %cst_28 = arith.constant 0.000000e+00 : bf16
    %62 = vector.broadcast %cst_28 : bf16 to vector<1x8x128xbf16>
    %63 = tpu.concatenate %62, %59, %62 in 0 : vector<1x8x128xbf16>, vector<8x8x128xbf16>, vector<1x8x128xbf16> -> vector<10x8x128xbf16>
    %64 = vector.extract_strided_slice %63 {offsets = [0, 0, 0], sizes = [8, 8, 128], strides = [1, 1, 1]} : vector<10x8x128xbf16> to vector<8x8x128xbf16>
    %65 = vector.extract_strided_slice %63 {offsets = [1, 0, 0], sizes = [8, 8, 128], strides = [1, 1, 1]} : vector<10x8x128xbf16> to vector<8x8x128xbf16>
    %66 = vector.extract_strided_slice %63 {offsets = [2, 0, 0], sizes = [8, 8, 128], strides = [1, 1, 1]} : vector<10x8x128xbf16> to vector<8x8x128xbf16>
    %67 = tpu.concatenate %64, %65, %66 in 1 : vector<8x8x128xbf16>, vector<8x8x128xbf16>, vector<8x8x128xbf16> -> vector<8x24x128xbf16>
    %68 = vector.shape_cast %60 : vector<8x24xbf16> to vector<1x8x24xbf16>
    %69 = vector.shape_cast %68 : vector<1x8x24xbf16> to vector<1x8x24xbf16>
    %70 = vector.broadcast %69 : vector<1x8x24xbf16> to vector<8x8x24xbf16>
    "tpu.trace_start"() <{level = 10 : i32, message = "toj,tjv->tov"}> : () -> ()
    %cst_29 = arith.constant dense<0.000000e+00> : vector<8x8x128xf32>
    %71 = tpu.matmul %70, %67, %cst_29 {dimension_numbers = #tpu.dot_dimension_numbers<[2], [1], [1], [2], [0, 0, 0, 1, 1, 2], [0], [0]>} : vector<8x8x24xbf16>, vector<8x24x128xbf16>, vector<8x8x128xf32> -> vector<8x8x128xf32>
    "tpu.trace_stop"() : () -> ()
    %72 = vector.shape_cast %61 : vector<8x1xf32> to vector<1x8x1xf32>
    %73 = vector.broadcast %72 : vector<1x8x1xf32> to vector<8x8x128xf32>
    %74 = arith.addf %71, %73 : vector<8x8x128xf32>
    %cst_30 = arith.constant 0.000000e+00 : f32
    %75 = vector.broadcast %cst_30 : f32 to vector<8x8x128xf32>
    %76 = arith.maximumf %74, %75 : vector<8x8x128xf32>
    %77 = arith.truncf %76 : vector<8x8x128xf32> to vector<8x8x128xbf16>
    "tpu.trace_start"() <{level = 10 : i32, message = "tcv,tvw->tcw"}> : () -> ()
    %cst_31 = arith.constant dense<0.000000e+00> : vector<8x8x128xf32>
    %78 = tpu.matmul %77, %28, %cst_31 {dimension_numbers = #tpu.dot_dimension_numbers<[2], [1], [1], [2], [0, 0, 0, 1, 1, 2], [0], [0]>} : vector<8x8x128xbf16>, vector<8x128x128xbf16>, vector<8x8x128xf32> -> vector<8x8x128xf32>
    "tpu.trace_stop"() : () -> ()
    %79 = arith.truncf %78 : vector<8x8x128xf32> to vector<8x8x128xbf16>
    %c0_32 = arith.constant 0 : index
    %c0_33 = arith.constant 0 : index
    %80 = vector.load %arg8[%c0_32, %c0_33] : memref<16x24xbf16, #tpu.memory_space<vmem>>, vector<16x24xbf16>
    %c0_34 = arith.constant 0 : index
    %c0_35 = arith.constant 0 : index
    %81 = vector.load %arg9[%c0_34, %c0_35] : memref<16x1xf32, #tpu.memory_space<vmem>>, vector<16x1xf32>
    %cst_36 = arith.constant 0.000000e+00 : bf16
    %82 = vector.broadcast %cst_36 : bf16 to vector<1x8x128xbf16>
    %83 = tpu.concatenate %82, %79, %82 in 0 : vector<1x8x128xbf16>, vector<8x8x128xbf16>, vector<1x8x128xbf16> -> vector<10x8x128xbf16>
    %84 = vector.extract_strided_slice %83 {offsets = [0, 0, 0], sizes = [8, 8, 128], strides = [1, 1, 1]} : vector<10x8x128xbf16> to vector<8x8x128xbf16>
    %85 = vector.extract_strided_slice %83 {offsets = [1, 0, 0], sizes = [8, 8, 128], strides = [1, 1, 1]} : vector<10x8x128xbf16> to vector<8x8x128xbf16>
    %86 = vector.extract_strided_slice %83 {offsets = [2, 0, 0], sizes = [8, 8, 128], strides = [1, 1, 1]} : vector<10x8x128xbf16> to vector<8x8x128xbf16>
    %87 = tpu.concatenate %84, %85, %86 in 1 : vector<8x8x128xbf16>, vector<8x8x128xbf16>, vector<8x8x128xbf16> -> vector<8x24x128xbf16>
    %88 = vector.shape_cast %87 : vector<8x24x128xbf16> to vector<4x2x24x128xbf16>
    %89 = vector.extract_strided_slice %88 {offsets = [0, 0, 0, 0], sizes = [4, 1, 24, 128], strides = [1, 1, 1, 1]} : vector<4x2x24x128xbf16> to vector<4x1x24x128xbf16>
    %90 = vector.shape_cast %89 : vector<4x1x24x128xbf16> to vector<4x24x128xbf16>
    %91 = vector.shape_cast %80 : vector<16x24xbf16> to vector<1x16x24xbf16>
    %92 = vector.shape_cast %91 : vector<1x16x24xbf16> to vector<1x16x24xbf16>
    %93 = vector.broadcast %92 : vector<1x16x24xbf16> to vector<4x16x24xbf16>
    "tpu.trace_start"() <{level = 10 : i32, message = "toj,tjv->tov"}> : () -> ()
    %cst_37 = arith.constant dense<0.000000e+00> : vector<4x16x128xf32>
    %94 = tpu.matmul %93, %90, %cst_37 {dimension_numbers = #tpu.dot_dimension_numbers<[2], [1], [1], [2], [0, 0, 0, 1, 1, 2], [0], [0]>} : vector<4x16x24xbf16>, vector<4x24x128xbf16>, vector<4x16x128xf32> -> vector<4x16x128xf32>
    "tpu.trace_stop"() : () -> ()
    %95 = vector.shape_cast %81 : vector<16x1xf32> to vector<1x16x1xf32>
    %96 = vector.broadcast %95 : vector<1x16x1xf32> to vector<4x16x128xf32>
    %97 = arith.addf %94, %96 : vector<4x16x128xf32>
    %cst_38 = arith.constant 0.000000e+00 : f32
    %98 = vector.broadcast %cst_38 : f32 to vector<4x16x128xf32>
    %99 = arith.maximumf %97, %98 : vector<4x16x128xf32>
    %100 = arith.truncf %99 : vector<4x16x128xf32> to vector<4x16x128xbf16>
    %101 = vector.shape_cast %28 : vector<8x128x128xbf16> to vector<4x2x128x128xbf16>
    %102 = vector.extract_strided_slice %101 {offsets = [0, 0, 0, 0], sizes = [4, 1, 128, 128], strides = [1, 1, 1, 1]} : vector<4x2x128x128xbf16> to vector<4x1x128x128xbf16>
    %103 = vector.shape_cast %102 : vector<4x1x128x128xbf16> to vector<4x128x128xbf16>
    %104 = vector.extract_strided_slice %101 {offsets = [0, 1, 0, 0], sizes = [4, 1, 128, 128], strides = [1, 1, 1, 1]} : vector<4x2x128x128xbf16> to vector<4x1x128x128xbf16>
    %105 = vector.shape_cast %104 : vector<4x1x128x128xbf16> to vector<4x128x128xbf16>
    %106 = arith.addf %103, %105 : vector<4x128x128xbf16>
    %cst_39 = arith.constant 5.000000e-01 : bf16
    %107 = vector.broadcast %cst_39 : bf16 to vector<4x128x128xbf16>
    %108 = arith.mulf %106, %107 : vector<4x128x128xbf16>
    "tpu.trace_start"() <{level = 10 : i32, message = "tcv,tvw->tcw"}> : () -> ()
    %cst_40 = arith.constant dense<0.000000e+00> : vector<4x16x128xf32>
    %109 = tpu.matmul %100, %108, %cst_40 {dimension_numbers = #tpu.dot_dimension_numbers<[2], [1], [1], [2], [0, 0, 0, 1, 1, 2], [0], [0]>} : vector<4x16x128xbf16>, vector<4x128x128xbf16>, vector<4x16x128xf32> -> vector<4x16x128xf32>
    "tpu.trace_stop"() : () -> ()
    %110 = arith.truncf %109 : vector<4x16x128xf32> to vector<4x16x128xbf16>
    %c0_41 = arith.constant 0 : index
    %c0_42 = arith.constant 0 : index
    %111 = vector.load %arg10[%c0_41, %c0_42] : memref<8x48xbf16, #tpu.memory_space<vmem>>, vector<8x48xbf16>
    %c0_43 = arith.constant 0 : index
    %c0_44 = arith.constant 0 : index
    %112 = vector.load %arg11[%c0_43, %c0_44] : memref<8x1xf32, #tpu.memory_space<vmem>>, vector<8x1xf32>
    %cst_45 = arith.constant 0.000000e+00 : bf16
    %113 = vector.broadcast %cst_45 : bf16 to vector<1x16x128xbf16>
    %114 = tpu.concatenate %113, %110, %113 in 0 : vector<1x16x128xbf16>, vector<4x16x128xbf16>, vector<1x16x128xbf16> -> vector<6x16x128xbf16>
    %115 = vector.extract_strided_slice %114 {offsets = [0, 0, 0], sizes = [4, 16, 128], strides = [1, 1, 1]} : vector<6x16x128xbf16> to vector<4x16x128xbf16>
    %116 = vector.extract_strided_slice %114 {offsets = [1, 0, 0], sizes = [4, 16, 128], strides = [1, 1, 1]} : vector<6x16x128xbf16> to vector<4x16x128xbf16>
    %117 = vector.extract_strided_slice %114 {offsets = [2, 0, 0], sizes = [4, 16, 128], strides = [1, 1, 1]} : vector<6x16x128xbf16> to vector<4x16x128xbf16>
    %118 = tpu.concatenate %115, %116, %117 in 1 : vector<4x16x128xbf16>, vector<4x16x128xbf16>, vector<4x16x128xbf16> -> vector<4x48x128xbf16>
    %119 = vector.shape_cast %111 : vector<8x48xbf16> to vector<1x8x48xbf16>
    %120 = vector.shape_cast %119 : vector<1x8x48xbf16> to vector<1x8x48xbf16>
    %121 = vector.broadcast %120 : vector<1x8x48xbf16> to vector<4x8x48xbf16>
    "tpu.trace_start"() <{level = 10 : i32, message = "toj,tjv->tov"}> : () -> ()
    %cst_46 = arith.constant dense<0.000000e+00> : vector<4x8x128xf32>
    %122 = tpu.matmul %121, %118, %cst_46 {dimension_numbers = #tpu.dot_dimension_numbers<[2], [1], [1], [2], [0, 0, 0, 1, 1, 2], [0], [0]>} : vector<4x8x48xbf16>, vector<4x48x128xbf16>, vector<4x8x128xf32> -> vector<4x8x128xf32>
    "tpu.trace_stop"() : () -> ()
    %123 = vector.shape_cast %112 : vector<8x1xf32> to vector<1x8x1xf32>
    %124 = vector.broadcast %123 : vector<1x8x1xf32> to vector<4x8x128xf32>
    %125 = arith.addf %122, %124 : vector<4x8x128xf32>
    %cst_47 = arith.constant 0.000000e+00 : f32
    %126 = vector.broadcast %cst_47 : f32 to vector<4x8x128xf32>
    %127 = arith.maximumf %125, %126 : vector<4x8x128xf32>
    %128 = arith.truncf %127 : vector<4x8x128xf32> to vector<4x8x128xbf16>
    %129 = vector.extract_strided_slice %128 {offsets = [0, 0, 0], sizes = [4, 8, 6], strides = [1, 1, 1]} : vector<4x8x128xbf16> to vector<4x8x6xbf16>
    %130 = arith.extf %129 : vector<4x8x6xbf16> to vector<4x8x6xf32>
    %cst_48 = arith.constant dense<0.000000e+00> : vector<8x6xf32>
    %131 = vector.multi_reduction <add>, %130, %cst_48 [0] : vector<4x8x6xf32> to vector<8x6xf32>
    %cst_49 = arith.constant dense<0.000000e+00> : vector<8xf32>
    %132 = vector.multi_reduction <add>, %131, %cst_49 [1] : vector<8x6xf32> to vector<8xf32>
    %133 = vector.shape_cast %132 : vector<8xf32> to vector<8x1xf32>
    %cst_50 = arith.constant 0.0416666679 : f32
    %134 = vector.broadcast %cst_50 : f32 to vector<8x1xf32>
    %135 = arith.mulf %133, %134 : vector<8x1xf32>
    %136 = tpu.transpose %135, [1, 0] : vector<8x1xf32> -> vector<1x8xf32>
    %c0_51 = arith.constant 0 : index
    %c0_52 = arith.constant 0 : index
    %c0_53 = arith.constant 0 : index
    %137 = vector.load %arg12[%c0_51, %c0_52, %c0_53] : memref<1x1x8xf32, #tpu.memory_space<vmem>>, vector<1x1x8xf32>
    %138 = vector.shape_cast %137 : vector<1x1x8xf32> to vector<1x8xf32>
    %139 = vector.shape_cast %136 : vector<1x8xf32> to vector<1x1x8xf32>
    tpu.vector_store %arg12[%c0_51, %c0_52, %c0_53], %139 {strides = array<i32>} : memref<1x1x8xf32, #tpu.memory_space<vmem>>, vector<1x1x8xf32>,
    return
  }
  func.func @transform_0(%arg0: i32) -> (i32, i32, i32, i32) {
    %c0_i32 = arith.constant 0 : i32
    %c0_i32_0 = arith.constant 0 : i32
    %c0_i32_1 = arith.constant 0 : i32
    %c0_i32_2 = arith.constant 0 : i32
    return %arg0, %c0_i32, %c0_i32_0, %c0_i32_1 : i32, i32, i32, i32
  }
  func.func @transform_1(%arg0: i32) -> (i32, i32) {
    %c0_i32 = arith.constant 0 : i32
    %c0_i32_0 = arith.constant 0 : i32
    %c0_i32_1 = arith.constant 0 : i32
    return %c0_i32, %c0_i32_0 : i32, i32
  }
  func.func @transform_2(%arg0: i32) -> (i32, i32) {
    %c0_i32 = arith.constant 0 : i32
    %c0_i32_0 = arith.constant 0 : i32
    %c0_i32_1 = arith.constant 0 : i32
    return %c0_i32, %c0_i32_0 : i32, i32
  }
  func.func @transform_3(%arg0: i32) -> (i32, i32) {
    %c0_i32 = arith.constant 0 : i32
    %c0_i32_0 = arith.constant 0 : i32
    %c0_i32_1 = arith.constant 0 : i32
    return %c0_i32, %c0_i32_0 : i32, i32
  }
  func.func @transform_4(%arg0: i32) -> (i32, i32) {
    %c0_i32 = arith.constant 0 : i32
    %c0_i32_0 = arith.constant 0 : i32
    %c0_i32_1 = arith.constant 0 : i32
    return %c0_i32, %c0_i32_0 : i32, i32
  }
  func.func @transform_5(%arg0: i32) -> (i32, i32) {
    %c0_i32 = arith.constant 0 : i32
    %c0_i32_0 = arith.constant 0 : i32
    %c0_i32_1 = arith.constant 0 : i32
    return %c0_i32, %c0_i32_0 : i32, i32
  }
  func.func @transform_6(%arg0: i32) -> (i32, i32) {
    %c0_i32 = arith.constant 0 : i32
    %c0_i32_0 = arith.constant 0 : i32
    %c0_i32_1 = arith.constant 0 : i32
    return %c0_i32, %c0_i32_0 : i32, i32
  }
  func.func @transform_7(%arg0: i32) -> (i32, i32) {
    %c0_i32 = arith.constant 0 : i32
    %c0_i32_0 = arith.constant 0 : i32
    %c0_i32_1 = arith.constant 0 : i32
    return %c0_i32, %c0_i32_0 : i32, i32
  }
  func.func @transform_8(%arg0: i32) -> (i32, i32) {
    %c0_i32 = arith.constant 0 : i32
    %c0_i32_0 = arith.constant 0 : i32
    %c0_i32_1 = arith.constant 0 : i32
    return %c0_i32, %c0_i32_0 : i32, i32
  }
  func.func @transform_9(%arg0: i32) -> (i32, i32) {
    %c0_i32 = arith.constant 0 : i32
    %c0_i32_0 = arith.constant 0 : i32
    %c0_i32_1 = arith.constant 0 : i32
    return %c0_i32, %c0_i32_0 : i32, i32
  }
  func.func @transform_10(%arg0: i32) -> (i32, i32) {
    %c0_i32 = arith.constant 0 : i32
    %c0_i32_0 = arith.constant 0 : i32
    %c0_i32_1 = arith.constant 0 : i32
    return %c0_i32, %c0_i32_0 : i32, i32
  }
  func.func @transform_11(%arg0: i32) -> (i32, i32, i32) {
    %c0_i32 = arith.constant 0 : i32
    %c0_i32_0 = arith.constant 0 : i32
    %c0_i32_1 = arith.constant 0 : i32
    return %arg0, %c0_i32, %c0_i32_0 : i32, i32, i32
  }
}

</mosaic_0001>

<llo_original>
// kernel: _lambda_.1
$region0: #{_lambda_.1}
  #allocation0 [shape = 'u32[]', space=smem, size = 0x4, offset = 0x4, fixed_abs, tag = 'smem constant byte address 0x4 - core index']
  #allocation1 [shape = 'u32[72,128]{1,0:T(1,128)}', space=vmem, size = 0x9000, scoped, tag = 'internal scratch']
  %s0 = inlined_call_operand.vmem [shape: f32[2,8,6,4], index: 0, kind: input, shape index: {}]
  %s1 = inlined_call_operand.vmem [shape: f32[4,128], index: 1, kind: input, shape index: {}]
  %s2 = inlined_call_operand.vmem [shape: f32[4,128], index: 2, kind: input, shape index: {}]
  %s3 = inlined_call_operand.vmem [shape: bf16[8,12], index: 3, kind: input, shape index: {}]
  %s4 = inlined_call_operand.vmem [shape: f32[8,1], index: 4, kind: input, shape index: {}]
  %s5 = inlined_call_operand.vmem [shape: bf16[8,24], index: 5, kind: input, shape index: {}]
  %s6 = inlined_call_operand.vmem [shape: f32[8,1], index: 6, kind: input, shape index: {}]
  %s7 = inlined_call_operand.vmem [shape: bf16[16,24], index: 7, kind: input, shape index: {}]
  %s8 = inlined_call_operand.vmem [shape: f32[16,1], index: 8, kind: input, shape index: {}]
  %s9 = inlined_call_operand.vmem [shape: bf16[8,48], index: 9, kind: input, shape index: {}]
  %s10 = inlined_call_operand.vmem [shape: f32[8,1], index: 10, kind: input, shape index: {}]
  %s11 = inlined_call_operand.vmem [shape: f32[2,1,8], index: 11, kind: output, shape index: {}]
  %s12 = sld [smem:[#allocation0]]
  $region77: #{_lambda_.1} parent=0
    _
  %s14 = ssub.s32 1, %s12
  %s15 = scalar_select 0, %s14, %s12
  loop: start=0, step=1, limit=4
  $region2: #{_lambda_.1} parent=0 // loop_pre_header
    _
  $region3: #{_lambda_.1} parent=0 // loop_header
    %s17 = sphi 0, %s21
    %p18 = scmp.ge.s32.totalorder %s17, 4
    %s27 = sphi 0, %s29
    %s30 = sphi 0, %s27
    %s31 = sphi 0, %s30
    %s47 = sphi 0, %s31
    %s51 = sphi 0, %s51
    %s53 = sphi 0, %s51
    %s54 = sphi 0, %s53
    %s68 = sphi 0, %s54
    %s72 = sphi 0, %s72
    %s74 = sphi 0, %s72
    %s75 = sphi 0, %s74
    %s89 = sphi 0, %s75
    %s93 = sphi 0, %s93
    %s95 = sphi 0, %s93
    %s96 = sphi 0, %s95
    %s110 = sphi 0, %s96
    %s114 = sphi 0, %s114
    %s116 = sphi 0, %s114
    %s117 = sphi 0, %s116
    %s131 = sphi 0, %s117
    %s135 = sphi 0, %s135
    %s137 = sphi 0, %s135
    %s138 = sphi 0, %s137
    %s152 = sphi 0, %s138
    %s156 = sphi 0, %s156
    %s158 = sphi 0, %s156
    %s159 = sphi 0, %s158
    %s173 = sphi 0, %s159
    %s177 = sphi 0, %s177
    %s179 = sphi 0, %s177
    %s180 = sphi 0, %s179
    %s194 = sphi 0, %s180
    %s198 = sphi 0, %s198
    %s200 = sphi 0, %s198
    %s201 = sphi 0, %s200
    %s215 = sphi 0, %s201
    %s219 = sphi 0, %s219
    %s221 = sphi 0, %s219
    %s222 = sphi 0, %s221
    %s236 = sphi 0, %s222
    %s240 = sphi 0, %s240
    %s242 = sphi 0, %s240
    %s243 = sphi 0, %s242
    %s257 = sphi 0, %s243
    %s263 = sphi 0, %s265
    %s266 = sphi 0, %s263
    %s267 = sphi 0, %s266
    %s283 = sphi 0, %s267
  $region4: #{_lambda_.1} parent=0 // loop_header_branch
    %20 = sbr.rel (%p18) target = $region8
  $region5: #{_lambda_.1} parent=0 // loop_body
    %s22 = ssub.s32 %s17, 1
    %s23 = ssub.s32 %s17, 2
    %s24 = sadd.s32 %s17, 1
    %s25 = ssub.s32 %s17, %s24
    %p26 = scmp.eq.s32.totalorder %s25, 0
    %s28 = sadd.s32 %s27, 1
    %s29 = scalar_select %p26, %s27, %s28
    %p32 = pneg %p26
    %p33 = scmp.eq.s32.totalorder %s17, 1
    %p34 = por %p32, %p33
    %p35 = scmp.ne.s32.totalorder %s27, %s30
    %p36 = scmp.eq.s32.totalorder %s17, 0
    %p37 = por %p35, %p36
    %p38 = scmp.ne.s32.totalorder %s27, %s30
    %p39 = scmp.eq.s32.totalorder %s22, 1
    %p40 = por %p38, %p39
    %p41 = scmp.ne.s32.totalorder %s30, %s31
    %p42 = scmp.eq.s32.totalorder %s22, 0
    %p43 = por %p41, %p42
    %p44 = scmp.ne.s32.totalorder %s30, %s31
    %p45 = scmp.eq.s32.totalorder %s23, 1
    %p46 = por %p44, %p45
    %p48 = scmp.ne.s32.totalorder %s31, %s47
    %p49 = scmp.eq.s32.totalorder %s23, 0
    %p50 = por %p48, %p49
    %s52 = sadd.s32 %s51, 1
    %p55 = scmp.eq.s32.totalorder %s17, 1
    %p56 = scmp.ne.s32.totalorder %s51, %s53
    %p57 = scmp.eq.s32.totalorder %s17, 0
    %p58 = por %p56, %p57
    %p59 = scmp.ne.s32.totalorder %s51, %s53
    %p60 = scmp.eq.s32.totalorder %s22, 1
    %p61 = por %p59, %p60
    %p62 = scmp.ne.s32.totalorder %s53, %s54
    %p63 = scmp.eq.s32.totalorder %s22, 0
    %p64 = por %p62, %p63
    %p65 = scmp.ne.s32.totalorder %s53, %s54
    %p66 = scmp.eq.s32.totalorder %s23, 1
    %p67 = por %p65, %p66
    %p69 = scmp.ne.s32.totalorder %s54, %s68
    %p70 = scmp.eq.s32.totalorder %s23, 0
    %p71 = por %p69, %p70
    %s73 = sadd.s32 %s72, 1
    %p76 = scmp.eq.s32.totalorder %s17, 1
    %p77 = scmp.ne.s32.totalorder %s72, %s74
    %p78 = scmp.eq.s32.totalorder %s17, 0
    %p79 = por %p77, %p78
    %p80 = scmp.ne.s32.totalorder %s72, %s74
    %p81 = scmp.eq.s32.totalorder %s22, 1
    %p82 = por %p80, %p81
    %p83 = scmp.ne.s32.totalorder %s74, %s75
    %p84 = scmp.eq.s32.totalorder %s22, 0
    %p85 = por %p83, %p84
    %p86 = scmp.ne.s32.totalorder %s74, %s75
    %p87 = scmp.eq.s32.totalorder %s23, 1
    %p88 = por %p86, %p87
    %p90 = scmp.ne.s32.totalorder %s75, %s89
    %p91 = scmp.eq.s32.totalorder %s23, 0
    %p92 = por %p90, %p91
    %s94 = sadd.s32 %s93, 1
    %p97 = scmp.eq.s32.totalorder %s17, 1
    %p98 = scmp.ne.s32.totalorder %s93, %s95
    %p99 = scmp.eq.s32.totalorder %s17, 0
    %p100 = por %p98, %p99
    %p101 = scmp.ne.s32.totalorder %s93, %s95
    %p102 = scmp.eq.s32.totalorder %s22, 1
    %p103 = por %p101, %p102
    %p104 = scmp.ne.s32.totalorder %s95, %s96
    %p105 = scmp.eq.s32.totalorder %s22, 0
    %p106 = por %p104, %p105
    %p107 = scmp.ne.s32.totalorder %s95, %s96
    %p108 = scmp.eq.s32.totalorder %s23, 1
    %p109 = por %p107, %p108
    %p111 = scmp.ne.s32.totalorder %s96, %s110
    %p112 = scmp.eq.s32.totalorder %s23, 0
    %p113 = por %p111, %p112
    %s115 = sadd.s32 %s114, 1
    %p118 = scmp.eq.s32.totalorder %s17, 1
    %p119 = scmp.ne.s32.totalorder %s114, %s116
    %p120 = scmp.eq.s32.totalorder %s17, 0
    %p121 = por %p119, %p120
    %p122 = scmp.ne.s32.totalorder %s114, %s116
    %p123 = scmp.eq.s32.totalorder %s22, 1
    %p124 = por %p122, %p123
    %p125 = scmp.ne.s32.totalorder %s116, %s117
    %p126 = scmp.eq.s32.totalorder %s22, 0
    %p127 = por %p125, %p126
    %p128 = scmp.ne.s32.totalorder %s116, %s117
    %p129 = scmp.eq.s32.totalorder %s23, 1
    %p130 = por %p128, %p129
    %p132 = scmp.ne.s32.totalorder %s117, %s131
    %p133 = scmp.eq.s32.totalorder %s23, 0
    %p134 = por %p132, %p133
    %s136 = sadd.s32 %s135, 1
    %p139 = scmp.eq.s32.totalorder %s17, 1
    %p140 = scmp.ne.s32.totalorder %s135, %s137
    %p141 = scmp.eq.s32.totalorder %s17, 0
    %p142 = por %p140, %p141
    %p143 = scmp.ne.s32.totalorder %s135, %s137
    %p144 = scmp.eq.s32.totalorder %s22, 1
    %p145 = por %p143, %p144
    %p146 = scmp.ne.s32.totalorder %s137, %s138
    %p147 = scmp.eq.s32.totalorder %s22, 0
    %p148 = por %p146, %p147
    %p149 = scmp.ne.s32.totalorder %s137, %s138
    %p150 = scmp.eq.s32.totalorder %s23, 1
    %p151 = por %p149, %p150
    %p153 = scmp.ne.s32.totalorder %s138, %s152
    %p154 = scmp.eq.s32.totalorder %s23, 0
    %p155 = por %p153, %p154
    %s157 = sadd.s32 %s156, 1
    %p160 = scmp.eq.s32.totalorder %s17, 1
    %p161 = scmp.ne.s32.totalorder %s156, %s158
    %p162 = scmp.eq.s32.totalorder %s17, 0
    %p163 = por %p161, %p162
    %p164 = scmp.ne.s32.totalorder %s156, %s158
    %p165 = scmp.eq.s32.totalorder %s22, 1
    %p166 = por %p164, %p165
    %p167 = scmp.ne.s32.totalorder %s158, %s159
    %p168 = scmp.eq.s32.totalorder %s22, 0
    %p169 = por %p167, %p168
    %p170 = scmp.ne.s32.totalorder %s158, %s159
    %p171 = scmp.eq.s32.totalorder %s23, 1
    %p172 = por %p170, %p171
    %p174 = scmp.ne.s32.totalorder %s159, %s173
    %p175 = scmp.eq.s32.totalorder %s23, 0
    %p176 = por %p174, %p175
    %s178 = sadd.s32 %s177, 1
    %p181 = scmp.eq.s32.totalorder %s17, 1
    %p182 = scmp.ne.s32.totalorder %s177, %s179
    %p183 = scmp.eq.s32.totalorder %s17, 0
    %p184 = por %p182, %p183
    %p185 = scmp.ne.s32.totalorder %s177, %s179
    %p186 = scmp.eq.s32.totalorder %s22, 1
    %p187 = por %p185, %p186
    %p188 = scmp.ne.s32.totalorder %s179, %s180
    %p189 = scmp.eq.s32.totalorder %s22, 0
    %p190 = por %p188, %p189
    %p191 = scmp.ne.s32.totalorder %s179, %s180
    %p192 = scmp.eq.s32.totalorder %s23, 1
    %p193 = por %p191, %p192
    %p195 = scmp.ne.s32.totalorder %s180, %s194
    %p196 = scmp.eq.s32.totalorder %s23, 0
    %p197 = por %p195, %p196
    %s199 = sadd.s32 %s198, 1
    %p202 = scmp.eq.s32.totalorder %s17, 1
    %p203 = scmp.ne.s32.totalorder %s198, %s200
    %p204 = scmp.eq.s32.totalorder %s17, 0
    %p205 = por %p203, %p204
    %p206 = scmp.ne.s32.totalorder %s198, %s200
    %p207 = scmp.eq.s32.totalorder %s22, 1
    %p208 = por %p206, %p207
    %p209 = scmp.ne.s32.totalorder %s200, %s201
    %p210 = scmp.eq.s32.totalorder %s22, 0
    %p211 = por %p209, %p210
    %p212 = scmp.ne.s32.totalorder %s200, %s201
    %p213 = scmp.eq.s32.totalorder %s23, 1
    %p214 = por %p212, %p213
    %p216 = scmp.ne.s32.totalorder %s201, %s215
    %p217 = scmp.eq.s32.totalorder %s23, 0
    %p218 = por %p216, %p217
    %s220 = sadd.s32 %s219, 1
    %p223 = scmp.eq.s32.totalorder %s17, 1
    %p224 = scmp.ne.s32.totalorder %s219, %s221
    %p225 = scmp.eq.s32.totalorder %s17, 0
    %p226 = por %p224, %p225
    %p227 = scmp.ne.s32.totalorder %s219, %s221
    %p228 = scmp.eq.s32.totalorder %s22, 1
    %p229 = por %p227, %p228
    %p230 = scmp.ne.s32.totalorder %s221, %s222
    %p231 = scmp.eq.s32.totalorder %s22, 0
    %p232 = por %p230, %p231
    %p233 = scmp.ne.s32.totalorder %s221, %s222
    %p234 = scmp.eq.s32.totalorder %s23, 1
    %p235 = por %p233, %p234
    %p237 = scmp.ne.s32.totalorder %s222, %s236
    %p238 = scmp.eq.s32.totalorder %s23, 0
    %p239 = por %p237, %p238
    %s241 = sadd.s32 %s240, 1
    %p244 = scmp.eq.s32.totalorder %s17, 1
    %p245 = scmp.ne.s32.totalorder %s240, %s242
    %p246 = scmp.eq.s32.totalorder %s17, 0
    %p247 = por %p245, %p246
    %p248 = scmp.ne.s32.totalorder %s240, %s242
    %p249 = scmp.eq.s32.totalorder %s22, 1
    %p250 = por %p248, %p249
    %p251 = scmp.ne.s32.totalorder %s242, %s243
    %p252 = scmp.eq.s32.totalorder %s22, 0
    %p253 = por %p251, %p252
    %p254 = scmp.ne.s32.totalorder %s242, %s243
    %p255 = scmp.eq.s32.totalorder %s23, 1
    %p256 = por %p254, %p255
    %p258 = scmp.ne.s32.totalorder %s243, %s257
    %p259 = scmp.eq.s32.totalorder %s23, 0
    %p260 = por %p258, %p259
    %s261 = ssub.s32 %s17, %s24
    %p262 = scmp.eq.s32.totalorder %s261, 0
    %s264 = sadd.s32 %s263, 1
    %s265 = scalar_select %p262, %s263, %s264
    %p268 = pneg %p262
    %p269 = scmp.eq.s32.totalorder %s17, 1
    %p270 = por %p268, %p269
    %p271 = scmp.ne.s32.totalorder %s263, %s266
    %p272 = scmp.eq.s32.totalorder %s17, 0
    %p273 = por %p271, %p272
    %p274 = scmp.ne.s32.totalorder %s263, %s266
    %p275 = scmp.eq.s32.totalorder %s22, 1
    %p276 = por %p274, %p275
    %p277 = scmp.ne.s32.totalorder %s266, %s267
    %p278 = scmp.eq.s32.totalorder %s22, 0
    %p279 = por %p277, %p278
    %p280 = scmp.ne.s32.totalorder %s266, %s267
    %p281 = scmp.eq.s32.totalorder %s23, 1
    %p282 = por %p280, %p281
    %p284 = scmp.ne.s32.totalorder %s267, %s283
    %p285 = scmp.eq.s32.totalorder %s23, 0
    %p286 = por %p284, %p285
    %p287 = scmp.le.s32.totalorder 1, %s17
    %p288 = scmp.lt.s32.totalorder %s17, 3
    %p289 = pnand %p287, %p288
    %p290 = pneg %p289
    // Predicated region
    $region9: #{_lambda_.1} parent=5 // pred_check
      _
    $region10: #{_lambda_.1} parent=5 // pred_check_branch
      %292 = sbr.rel (%p289) target = $region12
    $region11: #{_lambda_.1} parent=5 // pred_region
      %s293 = ssub.s32 %s17, 1
      // Predicated region
      $region13: #{_lambda_.1} parent=11 // pred_check
        %p294 = pneg %p64
      $region14: #{_lambda_.1} parent=11 // pred_check_branch
        %296 = sbr.rel (%p294) target = $region16
      $region15: #{_lambda_.1} parent=11 // pred_region
        _
      $region16: #{_lambda_.1} parent=11 // pred_fallthru
        _
      // Predicated region
      $region17: #{_lambda_.1} parent=11 // pred_check
        %p297 = pneg %p85
      $region18: #{_lambda_.1} parent=11 // pred_check_branch
        %299 = sbr.rel (%p297) target = $region20
      $region19: #{_lambda_.1} parent=11 // pred_region
        _
      $region20: #{_lambda_.1} parent=11 // pred_fallthru
        _
      // Predicated region
      $region21: #{_lambda_.1} parent=11 // pred_check
        %p300 = pneg %p106
      $region22: #{_lambda_.1} parent=11 // pred_check_branch
        %302 = sbr.rel (%p300) target = $region24
      $region23: #{_lambda_.1} parent=11 // pred_region
        _
      $region24: #{_lambda_.1} parent=11 // pred_fallthru
        _
      // Predicated region
      $region25: #{_lambda_.1} parent=11 // pred_check
        %p303 = pneg %p127
      $region26: #{_lambda_.1} parent=11 // pred_check_branch
        %305 = sbr.rel (%p303) target = $region28
      $region27: #{_lambda_.1} parent=11 // pred_region
        _
      $region28: #{_lambda_.1} parent=11 // pred_fallthru
        _
      // Predicated region
      $region29: #{_lambda_.1} parent=11 // pred_check
        %p306 = pneg %p148
      $region30: #{_lambda_.1} parent=11 // pred_check_branch
        %308 = sbr.rel (%p306) target = $region32
      $region31: #{_lambda_.1} parent=11 // pred_region
        _
      $region32: #{_lambda_.1} parent=11 // pred_fallthru
        _
      // Predicated region
      $region33: #{_lambda_.1} parent=11 // pred_check
        %p309 = pneg %p169
      $region34: #{_lambda_.1} parent=11 // pred_check_branch
        %311 = sbr.rel (%p309) target = $region36
      $region35: #{_lambda_.1} parent=11 // pred_region
        _
      $region36: #{_lambda_.1} parent=11 // pred_fallthru
        _
      // Predicated region
      $region37: #{_lambda_.1} parent=11 // pred_check
        %p312 = pneg %p190
      $region38: #{_lambda_.1} parent=11 // pred_check_branch
        %314 = sbr.rel (%p312) target = $region40
      $region39: #{_lambda_.1} parent=11 // pred_region
        _
      $region40: #{_lambda_.1} parent=11 // pred_fallthru
        _
      // Predicated region
      $region41: #{_lambda_.1} parent=11 // pred_check
        %p315 = pneg %p211
      $region42: #{_lambda_.1} parent=11 // pred_check_branch
        %317 = sbr.rel (%p315) target = $region44
      $region43: #{_lambda_.1} parent=11 // pred_region
        _
      $region44: #{_lambda_.1} parent=11 // pred_fallthru
        _
      // Predicated region
      $region45: #{_lambda_.1} parent=11 // pred_check
        %p318 = pneg %p232
      $region46: #{_lambda_.1} parent=11 // pred_check_branch
        %320 = sbr.rel (%p318) target = $region48
      $region47: #{_lambda_.1} parent=11 // pred_region
        _
      $region48: #{_lambda_.1} parent=11 // pred_fallthru
        _
      // Predicated region
      $region49: #{_lambda_.1} parent=11 // pred_check
        %p321 = pneg %p253
      $region50: #{_lambda_.1} parent=11 // pred_check_branch
        %323 = sbr.rel (%p321) target = $region52
      $region51: #{_lambda_.1} parent=11 // pred_region
        _
      $region52: #{_lambda_.1} parent=11 // pred_fallthru
        _
    $region12: #{_lambda_.1} parent=5 // pred_fallthru
      _
    %p324 = scmp.lt.s32.totalorder %s17, 2
    // Predicated region
    $region53: #{_lambda_.1} parent=5 // pred_check
      %p325 = pneg %p324
    $region54: #{_lambda_.1} parent=5 // pred_check_branch
      %327 = sbr.rel (%p325) target = $region56
    $region55: #{_lambda_.1} parent=5 // pred_region
      // Predicated region
      $region57: #{_lambda_.1} parent=55 // pred_check
        %p328 = pneg %p37
      $region58: #{_lambda_.1} parent=55 // pred_check_branch
        %330 = sbr.rel (%p328) target = $region60
      $region59: #{_lambda_.1} parent=55 // pred_region
        %p331 = scmp.lt.s32.totalorder %s17, 1
        %s332 = scalar_select %p331, %s17, 1
        %s333 = smul.addr %s332, 8
        %s334 = smul.addr %s333, 8
        %s335 = scalar_lea.vmem %s0, %s334
      $region60: #{_lambda_.1} parent=55 // pred_fallthru
        _
    $region56: #{_lambda_.1} parent=5 // pred_fallthru
      _
    %p336 = scmp.le.s32.totalorder 1, %s17
    %p337 = scmp.lt.s32.totalorder %s17, 3
    %p338 = pnand %p336, %p337
    %p339 = pneg %p338
    // Predicated region
    $region61: #{_lambda_.1} parent=5 // pred_check
      _
    $region62: #{_lambda_.1} parent=5 // pred_check_branch
      %341 = sbr.rel (%p338) target = $region64
    $region63: #{_lambda_.1} parent=5 // pred_region
      %s342 = ssub.s32 %s17, 1
      %p343 = scmp.lt.s32.totalorder %s22, 1
      %s344 = scalar_select %p343, %s22, 1
      %s345 = smul.addr %s344, 8
      %s346 = smul.addr %s345, 8
      %s347 = scalar_lea.vmem %s0, %s346
      %p348 = pneg %p43
      %p349 = pneg %p40
      %p350 = pneg %p64
      %p351 = pneg %p61
      %p352 = pneg %p85
      %p353 = pneg %p82
      %p354 = pneg %p106
      %p355 = pneg %p103
      %p356 = pneg %p127
      %p357 = pneg %p124
      %p358 = pneg %p148
      %p359 = pneg %p145
      %p360 = pneg %p169
      %p361 = pneg %p166
      %p362 = pneg %p190
      %p363 = pneg %p187
      %p364 = pneg %p211
      %p365 = pneg %p208
      %p366 = pneg %p232
      %p367 = pneg %p229
      %p368 = pneg %p253
      %p369 = pneg %p250
      %p370 = pneg %p279
      %p371 = pneg %p276
      %p372 = scmp.lt.s32.totalorder %s22, 1
      %s373 = scalar_select %p372, %s22, 1
      %s374 = scalar_lea.vmem %s11, %s373
      %p375 = scmp.lt.s32.totalorder %s22, 1
      %s376 = scalar_select %p375, %s22, 1
      %s377 = smul.addr %s376, 8
      %s378 = smul.addr %s377, 8
      %s379 = scalar_lea.vmem %s0, %s378
      %p380 = scmp.lt.s32.totalorder %s22, 1
      %s381 = scalar_select %p380, %s22, 1
      %s382 = scalar_lea.vmem %s11, %s381
      %v384 = vld [vmem:[%s379] sm:$0x3f]
      %v385 = vld [vmem:[%s379 + $0x8] sm:$0x3f]
      %v386 = vld [vmem:[%s379 + $0x10] sm:$0x3f]
      %v387 = vld [vmem:[%s379 + $0x18] sm:$0x3f]
      %v388 = vld [vmem:[%s379 + $0x20] sm:$0x3f]
      %v389 = vld [vmem:[%s379 + $0x28] sm:$0x3f]
      %v390 = vld [vmem:[%s379 + $0x30] sm:$0x3f]
      %v391 = vld [vmem:[%s379 + $0x38] sm:$0x3f]
      %392 = vxpose.xlu0.b32.start [1/16] %v384, 128
      %393 = vxpose.xlu0.b32.cont [2/16] 0.0, 128
      %394 = vxpose.xlu0.b32.cont [3/16] 0.0, 128
      %395 = vxpose.xlu0.b32.cont [4/16] 0.0, 128
      %396 = vxpose.xlu0.b32.cont [5/16] 0.0, 128
      %397 = vxpose.xlu0.b32.cont [6/16] 0.0, 128
      %398 = vxpose.xlu0.b32.cont [7/16] 0.0, 128
      %399 = vxpose.xlu0.b32.cont [8/16] 0.0, 128
      %400 = vxpose.xlu0.b32.cont [9/16] 0.0, 128
      %401 = vxpose.xlu0.b32.cont [10/16] 0.0, 128
      %402 = vxpose.xlu0.b32.cont [11/16] 0.0, 128
      %403 = vxpose.xlu0.b32.cont [12/16] 0.0, 128
      %404 = vxpose.xlu0.b32.cont [13/16] 0.0, 128
      %405 = vxpose.xlu0.b32.cont [14/16] 0.0, 128
      %406 = vxpose.xlu0.b32.cont [15/16] 0.0, 128
      %407 = vxpose.xlu0.b32.end [16/16] 0.0, 128
      %v408 = vpop.trf.xlu0
      %v409 = vpop.trf.xlu0
      %v410 = vpop.trf.xlu0
      %v411 = vpop.trf.xlu0
      %v412 = vpop.trf.xlu0
      %v413 = vpop.trf.xlu0
      %v414 = vpop.trf.xlu0
      %v415 = vpop.trf.xlu0
      %v416 = vpop.trf.xlu0
      %v417 = vpop.trf.xlu0
      %v418 = vpop.trf.xlu0
      %v419 = vpop.trf.xlu0
      %v420 = vpop.trf.xlu0
      %v421 = vpop.trf.xlu0
      %v422 = vpop.trf.xlu0
      %v423 = vpop.trf.xlu0
      %424 = vxpose.xlu0.b32.start [1/16] %v385, 128
      %425 = vxpose.xlu0.b32.cont [2/16] 0.0, 128
      %426 = vxpose.xlu0.b32.cont [3/16] 0.0, 128
      %427 = vxpose.xlu0.b32.cont [4/16] 0.0, 128
      %428 = vxpose.xlu0.b32.cont [5/16] 0.0, 128
      %429 = vxpose.xlu0.b32.cont [6/16] 0.0, 128
      %430 = vxpose.xlu0.b32.cont [7/16] 0.0, 128
      %431 = vxpose.xlu0.b32.cont [8/16] 0.0, 128
      %432 = vxpose.xlu0.b32.cont [9/16] 0.0, 128
      %433 = vxpose.xlu0.b32.cont [10/16] 0.0, 128
      %434 = vxpose.xlu0.b32.cont [11/16] 0.0, 128
      %435 = vxpose.xlu0.b32.cont [12/16] 0.0, 128
      %436 = vxpose.xlu0.b32.cont [13/16] 0.0, 128
      %437 = vxpose.xlu0.b32.cont [14/16] 0.0, 128
      %438 = vxpose.xlu0.b32.cont [15/16] 0.0, 128
      %439 = vxpose.xlu0.b32.end [16/16] 0.0, 128
      %v440 = vpop.trf.xlu0
      %v441 = vpop.trf.xlu0
      %v442 = vpop.trf.xlu0
      %v443 = vpop.trf.xlu0
      %v444 = vpop.trf.xlu0
      %v445 = vpop.trf.xlu0
      %v446 = vpop.trf.xlu0
      %v447 = vpop.trf.xlu0
      %v448 = vpop.trf.xlu0
      %v449 = vpop.trf.xlu0
      %v450 = vpop.trf.xlu0
      %v451 = vpop.trf.xlu0
      %v452 = vpop.trf.xlu0
      %v453 = vpop.trf.xlu0
      %v454 = vpop.trf.xlu0
      %v455 = vpop.trf.xlu0
      %456 = vxpose.xlu0.b32.start [1/16] %v386, 128
      %457 = vxpose.xlu0.b32.cont [2/16] 0.0, 128
      %458 = vxpose.xlu0.b32.cont [3/16] 0.0, 128
      %459 = vxpose.xlu0.b32.cont [4/16] 0.0, 128
      %460 = vxpose.xlu0.b32.cont [5/16] 0.0, 128
      %461 = vxpose.xlu0.b32.cont [6/16] 0.0, 128
      %462 = vxpose.xlu0.b32.cont [7/16] 0.0, 128
      %463 = vxpose.xlu0.b32.cont [8/16] 0.0, 128
      %464 = vxpose.xlu0.b32.cont [9/16] 0.0, 128
      %465 = vxpose.xlu0.b32.cont [10/16] 0.0, 128
      %466 = vxpose.xlu0.b32.cont [11/16] 0.0, 128
      %467 = vxpose.xlu0.b32.cont [12/16] 0.0, 128
      %468 = vxpose.xlu0.b32.cont [13/16] 0.0, 128
      %469 = vxpose.xlu0.b32.cont [14/16] 0.0, 128
      %470 = vxpose.xlu0.b32.cont [15/16] 0.0, 128
      %471 = vxpose.xlu0.b32.end [16/16] 0.0, 128
      %v472 = vpop.trf.xlu0
      %v473 = vpop.trf.xlu0
      %v474 = vpop.trf.xlu0
      %v475 = vpop.trf.xlu0
      %v476 = vpop.trf.xlu0
      %v477 = vpop.trf.xlu0
      %v478 = vpop.trf.xlu0
      %v479 = vpop.trf.xlu0
      %v480 = vpop.trf.xlu0
      %v481 = vpop.trf.xlu0
      %v482 = vpop.trf.xlu0
      %v483 = vpop.trf.xlu0
      %v484 = vpop.trf.xlu0
      %v485 = vpop.trf.xlu0
      %v486 = vpop.trf.xlu0
      %v487 = vpop.trf.xlu0
      %488 = vxpose.xlu0.b32.start [1/16] %v387, 128
      %489 = vxpose.xlu0.b32.cont [2/16] 0.0, 128
      %490 = vxpose.xlu0.b32.cont [3/16] 0.0, 128
      %491 = vxpose.xlu0.b32.cont [4/16] 0.0, 128
      %492 = vxpose.xlu0.b32.cont [5/16] 0.0, 128
      %493 = vxpose.xlu0.b32.cont [6/16] 0.0, 128
      %494 = vxpose.xlu0.b32.cont [7/16] 0.0, 128
      %495 = vxpose.xlu0.b32.cont [8/16] 0.0, 128
      %496 = vxpose.xlu0.b32.cont [9/16] 0.0, 128
      %497 = vxpose.xlu0.b32.cont [10/16] 0.0, 128
      %498 = vxpose.xlu0.b32.cont [11/16] 0.0, 128
      %499 = vxpose.xlu0.b32.cont [12/16] 0.0, 128
      %500 = vxpose.xlu0.b32.cont [13/16] 0.0, 128
      %501 = vxpose.xlu0.b32.cont [14/16] 0.0, 128
      %502 = vxpose.xlu0.b32.cont [15/16] 0.0, 128
      %503 = vxpose.xlu0.b32.end [16/16] 0.0, 128
      %v504 = vpop.trf.xlu0
      %v505 = vpop.trf.xlu0
      %v506 = vpop.trf.xlu0
      %v507 = vpop.trf.xlu0
      %v508 = vpop.trf.xlu0
      %v509 = vpop.trf.xlu0
      %v510 = vpop.trf.xlu0
      %v511 = vpop.trf.xlu0
      %v512 = vpop.trf.xlu0
      %v513 = vpop.trf.xlu0
      %v514 = vpop.trf.xlu0
      %v515 = vpop.trf.xlu0
      %v516 = vpop.trf.xlu0
      %v517 = vpop.trf.xlu0
      %v518 = vpop.trf.xlu0
      %v519 = vpop.trf.xlu0
      %520 = vxpose.xlu0.b32.start [1/16] %v388, 128
      %521 = vxpose.xlu0.b32.cont [2/16] 0.0, 128
      %522 = vxpose.xlu0.b32.cont [3/16] 0.0, 128
      %523 = vxpose.xlu0.b32.cont [4/16] 0.0, 128
      %524 = vxpose.xlu0.b32.cont [5/16] 0.0, 128
      %525 = vxpose.xlu0.b32.cont [6/16] 0.0, 128
      %526 = vxpose.xlu0.b32.cont [7/16] 0.0, 128
      %527 = vxpose.xlu0.b32.cont [8/16] 0.0, 128
      %528 = vxpose.xlu0.b32.cont [9/16] 0.0, 128
      %529 = vxpose.xlu0.b32.cont [10/16] 0.0, 128
      %530 = vxpose.xlu0.b32.cont [11/16] 0.0, 128
      %531 = vxpose.xlu0.b32.cont [12/16] 0.0, 128
      %532 = vxpose.xlu0.b32.cont [13/16] 0.0, 128
      %533 = vxpose.xlu0.b32.cont [14/16] 0.0, 128
      %534 = vxpose.xlu0.b32.cont [15/16] 0.0, 128
      %535 = vxpose.xlu0.b32.end [16/16] 0.0, 128
      %v536 = vpop.trf.xlu0
      %v537 = vpop.trf.xlu0
      %v538 = vpop.trf.xlu0
      %v539 = vpop.trf.xlu0
      %v540 = vpop.trf.xlu0
      %v541 = vpop.trf.xlu0
      %v542 = vpop.trf.xlu0
      %v543 = vpop.trf.xlu0
      %v544 = vpop.trf.xlu0
      %v545 = vpop.trf.xlu0
      %v546 = vpop.trf.xlu0
      %v547 = vpop.trf.xlu0
      %v548 = vpop.trf.xlu0
      %v549 = vpop.trf.xlu0
      %v550 = vpop.trf.xlu0
      %v551 = vpop.trf.xlu0
      %552 = vxpose.xlu0.b32.start [1/16] %v389, 128
      %553 = vxpose.xlu0.b32.cont [2/16] 0.0, 128
      %554 = vxpose.xlu0.b32.cont [3/16] 0.0, 128
      %555 = vxpose.xlu0.b32.cont [4/16] 0.0, 128
      %556 = vxpose.xlu0.b32.cont [5/16] 0.0, 128
      %557 = vxpose.xlu0.b32.cont [6/16] 0.0, 128
      %558 = vxpose.xlu0.b32.cont [7/16] 0.0, 128
      %559 = vxpose.xlu0.b32.cont [8/16] 0.0, 128
      %560 = vxpose.xlu0.b32.cont [9/16] 0.0, 128
      %561 = vxpose.xlu0.b32.cont [10/16] 0.0, 128
      %562 = vxpose.xlu0.b32.cont [11/16] 0.0, 128
      %563 = vxpose.xlu0.b32.cont [12/16] 0.0, 128
      %564 = vxpose.xlu0.b32.cont [13/16] 0.0, 128
      %565 = vxpose.xlu0.b32.cont [14/16] 0.0, 128
      %566 = vxpose.xlu0.b32.cont [15/16] 0.0, 128
      %567 = vxpose.xlu0.b32.end [16/16] 0.0, 128
      %v568 = vpop.trf.xlu0
      %v569 = vpop.trf.xlu0
      %v570 = vpop.trf.xlu0
      %v571 = vpop.trf.xlu0
      %v572 = vpop.trf.xlu0
      %v573 = vpop.trf.xlu0
      %v574 = vpop.trf.xlu0
      %v575 = vpop.trf.xlu0
      %v576 = vpop.trf.xlu0
      %v577 = vpop.trf.xlu0
      %v578 = vpop.trf.xlu0
      %v579 = vpop.trf.xlu0
      %v580 = vpop.trf.xlu0
      %v581 = vpop.trf.xlu0
      %v582 = vpop.trf.xlu0
      %v583 = vpop.trf.xlu0
      %584 = vxpose.xlu0.b32.start [1/16] %v390, 128
      %585 = vxpose.xlu0.b32.cont [2/16] 0.0, 128
      %586 = vxpose.xlu0.b32.cont [3/16] 0.0, 128
      %587 = vxpose.xlu0.b32.cont [4/16] 0.0, 128
      %588 = vxpose.xlu0.b32.cont [5/16] 0.0, 128
      %589 = vxpose.xlu0.b32.cont [6/16] 0.0, 128
      %590 = vxpose.xlu0.b32.cont [7/16] 0.0, 128
      %591 = vxpose.xlu0.b32.cont [8/16] 0.0, 128
      %592 = vxpose.xlu0.b32.cont [9/16] 0.0, 128
      %593 = vxpose.xlu0.b32.cont [10/16] 0.0, 128
      %594 = vxpose.xlu0.b32.cont [11/16] 0.0, 128
      %595 = vxpose.xlu0.b32.cont [12/16] 0.0, 128
      %596 = vxpose.xlu0.b32.cont [13/16] 0.0, 128
      %597 = vxpose.xlu0.b32.cont [14/16] 0.0, 128
      %598 = vxpose.xlu0.b32.cont [15/16] 0.0, 128
      %599 = vxpose.xlu0.b32.end [16/16] 0.0, 128
      %v600 = vpop.trf.xlu0
      %v601 = vpop.trf.xlu0
      %v602 = vpop.trf.xlu0
      %v603 = vpop.trf.xlu0
      %v604 = vpop.trf.xlu0
      %v605 = vpop.trf.xlu0
      %v606 = vpop.trf.xlu0
      %v607 = vpop.trf.xlu0
      %v608 = vpop.trf.xlu0
      %v609 = vpop.trf.xlu0
      %v610 = vpop.trf.xlu0
      %v611 = vpop.trf.xlu0
      %v612 = vpop.trf.xlu0
      %v613 = vpop.trf.xlu0
      %v614 = vpop.trf.xlu0
      %v615 = vpop.trf.xlu0
      %616 = vxpose.xlu0.b32.start [1/16] %v391, 128
      %617 = vxpose.xlu0.b32.cont [2/16] 0.0, 128
      %618 = vxpose.xlu0.b32.cont [3/16] 0.0, 128
      %619 = vxpose.xlu0.b32.cont [4/16] 0.0, 128
      %620 = vxpose.xlu0.b32.cont [5/16] 0.0, 128
      %621 = vxpose.xlu0.b32.cont [6/16] 0.0, 128
      %622 = vxpose.xlu0.b32.cont [7/16] 0.0, 128
      %623 = vxpose.xlu0.b32.cont [8/16] 0.0, 128
      %624 = vxpose.xlu0.b32.cont [9/16] 0.0, 128
      %625 = vxpose.xlu0.b32.cont [10/16] 0.0, 128
      %626 = vxpose.xlu0.b32.cont [11/16] 0.0, 128
      %627 = vxpose.xlu0.b32.cont [12/16] 0.0, 128
      %628 = vxpose.xlu0.b32.cont [13/16] 0.0, 128
      %629 = vxpose.xlu0.b32.cont [14/16] 0.0, 128
      %630 = vxpose.xlu0.b32.cont [15/16] 0.0, 128
      %631 = vxpose.xlu0.b32.end [16/16] 0.0, 128
      %v632 = vpop.trf.xlu0
      %v633 = vpop.trf.xlu0
      %v634 = vpop.trf.xlu0
      %v635 = vpop.trf.xlu0
      %v636 = vpop.trf.xlu0
      %v637 = vpop.trf.xlu0
      %v638 = vpop.trf.xlu0
      %v639 = vpop.trf.xlu0
      %v640 = vpop.trf.xlu0
      %v641 = vpop.trf.xlu0
      %v642 = vpop.trf.xlu0
      %v643 = vpop.trf.xlu0
      %v644 = vpop.trf.xlu0
      %v645 = vpop.trf.xlu0
      %v646 = vpop.trf.xlu0
      %v647 = vpop.trf.xlu0
      %vm648 = vcmask 31744
      %v650 = vsel %vm648, %v384, 0
      %652 = vmatpush.xpose.msra.mxu0 0.0
      %653 = vmatpush.xpose.msra.mxu0 0.0
      %654 = vmatpush.xpose.msra.mxu0 0.0
      %655 = vmatpush.xpose.msra.mxu0 0.0
      %656 = vmatpush.xpose.msra.mxu0 0.0
      %657 = vmatpush.xpose.msra.mxu0 0.0
      %658 = vmatpush.xpose.msra.mxu0 0.0
      %659 = vmatpush.xpose.msra.mxu0 0.0
      %660 = vmatpush.xpose.msra.mxu0 0.0
      %661 = vmatpush.xpose.msra.mxu0 0.0
      %662 = vmatpush.xpose.msra.mxu0 0.0
      %663 = vmatpush.xpose.msra.mxu0 0.0
      %664 = vmatpush.xpose.msra.mxu0 0.0
      %665 = vmatpush.xpose.msra.mxu0 0.0
      %666 = vmatpush.xpose.msra.mxu0 0.0
      %667 = vmatpush.xpose.msra.mxu0 %v650
      %668 = vmatmul.f32.gmra.mxu0 %v650
      %v669 = vpop.f32.mrf.mxu0
      %v670 = vadd.f32 0.0, %v669
      %671 = vdwg.mxu0
      %v673 = vsel %vm648, %v385, 0
      %675 = vmatpush.xpose.msra.mxu0 0.0
      %676 = vmatpush.xpose.msra.mxu0 0.0
      %677 = vmatpush.xpose.msra.mxu0 0.0
      %678 = vmatpush.xpose.msra.mxu0 0.0
      %679 = vmatpush.xpose.msra.mxu0 0.0
      %680 = vmatpush.xpose.msra.mxu0 0.0
      %681 = vmatpush.xpose.msra.mxu0 0.0
      %682 = vmatpush.xpose.msra.mxu0 0.0
      %683 = vmatpush.xpose.msra.mxu0 0.0
      %684 = vmatpush.xpose.msra.mxu0 0.0
      %685 = vmatpush.xpose.msra.mxu0 0.0
      %686 = vmatpush.xpose.msra.mxu0 0.0
      %687 = vmatpush.xpose.msra.mxu0 0.0
      %688 = vmatpush.xpose.msra.mxu0 0.0
      %689 = vmatpush.xpose.msra.mxu0 0.0
      %690 = vmatpush.xpose.msra.mxu0 %v673
      %691 = vmatmul.f32.gmra.mxu0 %v673
      %v692 = vpop.f32.mrf.mxu0
      %v693 = vadd.f32 0.0, %v692
      %694 = vdwg.mxu0
      %v696 = vsel %vm648, %v386, 0
      %698 = vmatpush.xpose.msra.mxu0 0.0
      %699 = vmatpush.xpose.msra.mxu0 0.0
      %700 = vmatpush.xpose.msra.mxu0 0.0
      %701 = vmatpush.xpose.msra.mxu0 0.0
      %702 = vmatpush.xpose.msra.mxu0 0.0
      %703 = vmatpush.xpose.msra.mxu0 0.0
      %704 = vmatpush.xpose.msra.mxu0 0.0
      %705 = vmatpush.xpose.msra.mxu0 0.0
      %706 = vmatpush.xpose.msra.mxu0 0.0
      %707 = vmatpush.xpose.msra.mxu0 0.0
      %708 = vmatpush.xpose.msra.mxu0 0.0
      %709 = vmatpush.xpose.msra.mxu0 0.0
      %710 = vmatpush.xpose.msra.mxu0 0.0
      %711 = vmatpush.xpose.msra.mxu0 0.0
      %712 = vmatpush.xpose.msra.mxu0 0.0
      %713 = vmatpush.xpose.msra.mxu0 %v696
      %714 = vmatmul.f32.gmra.mxu0 %v696
      %v715 = vpop.f32.mrf.mxu0
      %v716 = vadd.f32 0.0, %v715
      %717 = vdwg.mxu0
      %v719 = vsel %vm648, %v387, 0
      %721 = vmatpush.xpose.msra.mxu0 0.0
      %722 = vmatpush.xpose.msra.mxu0 0.0
      %723 = vmatpush.xpose.msra.mxu0 0.0
      %724 = vmatpush.xpose.msra.mxu0 0.0
      %725 = vmatpush.xpose.msra.mxu0 0.0
      %726 = vmatpush.xpose.msra.mxu0 0.0
      %727 = vmatpush.xpose.msra.mxu0 0.0
      %728 = vmatpush.xpose.msra.mxu0 0.0
      %729 = vmatpush.xpose.msra.mxu0 0.0
      %730 = vmatpush.xpose.msra.mxu0 0.0
      %731 = vmatpush.xpose.msra.mxu0 0.0
      %732 = vmatpush.xpose.msra.mxu0 0.0
      %733 = vmatpush.xpose.msra.mxu0 0.0
      %734 = vmatpush.xpose.msra.mxu0 0.0
      %735 = vmatpush.xpose.msra.mxu0 0.0
      %736 = vmatpush.xpose.msra.mxu0 %v719
      %737 = vmatmul.f32.gmra.mxu0 %v719
      %v738 = vpop.f32.mrf.mxu0
      %v739 = vadd.f32 0.0, %v738
      %740 = vdwg.mxu0
      %v742 = vsel %vm648, %v388, 0
      %744 = vmatpush.xpose.msra.mxu0 0.0
      %745 = vmatpush.xpose.msra.mxu0 0.0
      %746 = vmatpush.xpose.msra.mxu0 0.0
      %747 = vmatpush.xpose.msra.mxu0 0.0
      %748 = vmatpush.xpose.msra.mxu0 0.0
      %749 = vmatpush.xpose.msra.mxu0 0.0
      %750 = vmatpush.xpose.msra.mxu0 0.0
      %751 = vmatpush.xpose.msra.mxu0 0.0
      %752 = vmatpush.xpose.msra.mxu0 0.0
      %753 = vmatpush.xpose.msra.mxu0 0.0
      %754 = vmatpush.xpose.msra.mxu0 0.0
      %755 = vmatpush.xpose.msra.mxu0 0.0
      %756 = vmatpush.xpose.msra.mxu0 0.0
      %757 = vmatpush.xpose.msra.mxu0 0.0
      %758 = vmatpush.xpose.msra.mxu0 0.0
      %759 = vmatpush.xpose.msra.mxu0 %v742
      %760 = vmatmul.f32.gmra.mxu0 %v742
      %v761 = vpop.f32.mrf.mxu0
      %v762 = vadd.f32 0.0, %v761
      %763 = vdwg.mxu0
      %v765 = vsel %vm648, %v389, 0
      %767 = vmatpush.xpose.msra.mxu0 0.0
      %768 = vmatpush.xpose.msra.mxu0 0.0
      %769 = vmatpush.xpose.msra.mxu0 0.0
      %770 = vmatpush.xpose.msra.mxu0 0.0
      %771 = vmatpush.xpose.msra.mxu0 0.0
      %772 = vmatpush.xpose.msra.mxu0 0.0
      %773 = vmatpush.xpose.msra.mxu0 0.0
      %774 = vmatpush.xpose.msra.mxu0 0.0
      %775 = vmatpush.xpose.msra.mxu0 0.0
      %776 = vmatpush.xpose.msra.mxu0 0.0
      %777 = vmatpush.xpose.msra.mxu0 0.0
      %778 = vmatpush.xpose.msra.mxu0 0.0
      %779 = vmatpush.xpose.msra.mxu0 0.0
      %780 = vmatpush.xpose.msra.mxu0 0.0
      %781 = vmatpush.xpose.msra.mxu0 0.0
      %782 = vmatpush.xpose.msra.mxu0 %v765
      %783 = vmatmul.f32.gmra.mxu0 %v765
      %v784 = vpop.f32.mrf.mxu0
      %v785 = vadd.f32 0.0, %v784
      %786 = vdwg.mxu0
      %v788 = vsel %vm648, %v390, 0
      %790 = vmatpush.xpose.msra.mxu0 0.0
      %791 = vmatpush.xpose.msra.mxu0 0.0
      %792 = vmatpush.xpose.msra.mxu0 0.0
      %793 = vmatpush.xpose.msra.mxu0 0.0
      %794 = vmatpush.xpose.msra.mxu0 0.0
      %795 = vmatpush.xpose.msra.mxu0 0.0
      %796 = vmatpush.xpose.msra.mxu0 0.0
      %797 = vmatpush.xpose.msra.mxu0 0.0
      %798 = vmatpush.xpose.msra.mxu0 0.0
      %799 = vmatpush.xpose.msra.mxu0 0.0
      %800 = vmatpush.xpose.msra.mxu0 0.0
      %801 = vmatpush.xpose.msra.mxu0 0.0
      %802 = vmatpush.xpose.msra.mxu0 0.0
      %803 = vmatpush.xpose.msra.mxu0 0.0
      %804 = vmatpush.xpose.msra.mxu0 0.0
      %805 = vmatpush.xpose.msra.mxu0 %v788
      %806 = vmatmul.f32.gmra.mxu0 %v788
      %v807 = vpop.f32.mrf.mxu0
      %v808 = vadd.f32 0.0, %v807
      %809 = vdwg.mxu0
      %v811 = vsel %vm648, %v391, 0
      %813 = vmatpush.xpose.msra.mxu0 0.0
      %814 = vmatpush.xpose.msra.mxu0 0.0
      %815 = vmatpush.xpose.msra.mxu0 0.0
      %816 = vmatpush.xpose.msra.mxu0 0.0
      %817 = vmatpush.xpose.msra.mxu0 0.0
      %818 = vmatpush.xpose.msra.mxu0 0.0
      %819 = vmatpush.xpose.msra.mxu0 0.0
      %820 = vmatpush.xpose.msra.mxu0 0.0
      %821 = vmatpush.xpose.msra.mxu0 0.0
      %822 = vmatpush.xpose.msra.mxu0 0.0
      %823 = vmatpush.xpose.msra.mxu0 0.0
      %824 = vmatpush.xpose.msra.mxu0 0.0
      %825 = vmatpush.xpose.msra.mxu0 0.0
      %826 = vmatpush.xpose.msra.mxu0 0.0
      %827 = vmatpush.xpose.msra.mxu0 0.0
      %828 = vmatpush.xpose.msra.mxu0 %v811
      %829 = vmatmul.f32.gmra.mxu0 %v811
      %v830 = vpop.f32.mrf.mxu0
      %v831 = vadd.f32 0.0, %v830
      %832 = vdwg.mxu0
      %v833 = vmul.f32 %v384, %v384
      %v834 = vmul.f32 %v385, %v385
      %v835 = vmul.f32 %v386, %v386
      %v836 = vmul.f32 %v387, %v387
      %v837 = vmul.f32 %v388, %v388
      %v838 = vmul.f32 %v389, %v389
      %v839 = vmul.f32 %v390, %v390
      %v840 = vmul.f32 %v391, %v391
      %vm841 = vcmask 29696
      %v842 = vsel %vm841, %v833, 0.0
      %843 = vadd.xlane.f32.xlu0 %v842
      %v844 = vpop.xlane.xlu0 %843
      %v845 = vsel %vm841, %v834, 0.0
      %846 = vadd.xlane.f32.xlu0 %v845
      %v847 = vpop.xlane.xlu0 %846
      %v848 = vsel %vm841, %v835, 0.0
      %849 = vadd.xlane.f32.xlu0 %v848
      %v850 = vpop.xlane.xlu0 %849
      %v851 = vsel %vm841, %v836, 0.0
      %852 = vadd.xlane.f32.xlu0 %v851
      %v853 = vpop.xlane.xlu0 %852
      %v854 = vsel %vm841, %v837, 0.0
      %855 = vadd.xlane.f32.xlu0 %v854
      %v856 = vpop.xlane.xlu0 %855
      %v857 = vsel %vm841, %v838, 0.0
      %858 = vadd.xlane.f32.xlu0 %v857
      %v859 = vpop.xlane.xlu0 %858
      %v860 = vsel %vm841, %v839, 0.0
      %861 = vadd.xlane.f32.xlu0 %v860
      %v862 = vpop.xlane.xlu0 %861
      %v863 = vsel %vm841, %v840, 0.0
      %864 = vadd.xlane.f32.xlu0 %v863
      %v865 = vpop.xlane.xlu0 %864
      %v866 = vmul.f32 %v408, %v408
      %v867 = vmul.f32 %v440, %v440
      %v868 = vmul.f32 %v472, %v472
      %v869 = vmul.f32 %v504, %v504
      %v870 = vmul.f32 %v536, %v536
      %v871 = vmul.f32 %v568, %v568
      %v872 = vmul.f32 %v600, %v600
      %v873 = vmul.f32 %v632, %v632
      %vm874 = vcmask 44032
      %v875 = vsel %vm874, %v866, 0.0
      %v876 = vrot.slane %v875, 4
      %v877 = vadd.f32 %v875, %v876
      %v878 = vrot.slane %v877, 2
      %v879 = vadd.f32 %v877, %v878
      %v880 = vrot.slane %v879, 1
      %v881 = vadd.f32 %v879, %v880
      %v882 = vsel %vm874, %v867, 0.0
      %v883 = vrot.slane %v882, 4
      %v884 = vadd.f32 %v882, %v883
      %v885 = vrot.slane %v884, 2
      %v886 = vadd.f32 %v884, %v885
      %v887 = vrot.slane %v886, 1
      %v888 = vadd.f32 %v886, %v887
      %v889 = vsel %vm874, %v868, 0.0
      %v890 = vrot.slane %v889, 4
      %v891 = vadd.f32 %v889, %v890
      %v892 = vrot.slane %v891, 2
      %v893 = vadd.f32 %v891, %v892
      %v894 = vrot.slane %v893, 1
      %v895 = vadd.f32 %v893, %v894
      %v896 = vsel %vm874, %v869, 0.0
      %v897 = vrot.slane %v896, 4
      %v898 = vadd.f32 %v896, %v897
      %v899 = vrot.slane %v898, 2
      %v900 = vadd.f32 %v898, %v899
      %v901 = vrot.slane %v900, 1
      %v902 = vadd.f32 %v900, %v901
      %v903 = vsel %vm874, %v870, 0.0
      %v904 = vrot.slane %v903, 4
      %v905 = vadd.f32 %v903, %v904
      %v906 = vrot.slane %v905, 2
      %v907 = vadd.f32 %v905, %v906
      %v908 = vrot.slane %v907, 1
      %v909 = vadd.f32 %v907, %v908
      %v910 = vsel %vm874, %v871, 0.0
      %v911 = vrot.slane %v910, 4
      %v912 = vadd.f32 %v910, %v911
      %v913 = vrot.slane %v912, 2
      %v914 = vadd.f32 %v912, %v913
      %v915 = vrot.slane %v914, 1
      %v916 = vadd.f32 %v914, %v915
      %v917 = vsel %vm874, %v872, 0.0
      %v918 = vrot.slane %v917, 4
      %v919 = vadd.f32 %v917, %v918
      %v920 = vrot.slane %v919, 2
      %v921 = vadd.f32 %v919, %v920
      %v922 = vrot.slane %v921, 1
      %v923 = vadd.f32 %v921, %v922
      %v924 = vsel %vm874, %v873, 0.0
      %v925 = vrot.slane %v924, 4
      %v926 = vadd.f32 %v924, %v925
      %v927 = vrot.slane %v926, 2
      %v928 = vadd.f32 %v926, %v927
      %v929 = vrot.slane %v928, 1
      %v930 = vadd.f32 %v928, %v929
      %v931 = vadd.f32 %v844, %v881
      %v932 = vadd.f32 %v847, %v888
      %v933 = vadd.f32 %v850, %v895
      %v934 = vadd.f32 %v853, %v902
      %v935 = vadd.f32 %v856, %v909
      %v936 = vadd.f32 %v859, %v916
      %v937 = vadd.f32 %v862, %v923
      %v938 = vadd.f32 %v865, %v930
      %v939 = vmul.f32 %v670, 2.0
      %v940 = vmul.f32 %v693, 2.0
      %v941 = vmul.f32 %v716, 2.0
      %v942 = vmul.f32 %v739, 2.0
      %v943 = vmul.f32 %v762, 2.0
      %v944 = vmul.f32 %v785, 2.0
      %v945 = vmul.f32 %v808, 2.0
      %v946 = vmul.f32 %v831, 2.0
      %v947 = vsub.f32 %v931, %v939
      %v948 = vsub.f32 %v932, %v940
      %v949 = vsub.f32 %v933, %v941
      %v950 = vsub.f32 %v934, %v942
      %v951 = vsub.f32 %v935, %v943
      %v952 = vsub.f32 %v936, %v944
      %v953 = vsub.f32 %v937, %v945
      %v954 = vsub.f32 %v938, %v946
      %v955 = vmax.f32 %v947, 0.0
      %v956 = vmax.f32 %v948, 0.0
      %v957 = vmax.f32 %v949, 0.0
      %v958 = vmax.f32 %v950, 0.0
      %v959 = vmax.f32 %v951, 0.0
      %v960 = vmax.f32 %v952, 0.0
      %v961 = vmax.f32 %v953, 0.0
      %v962 = vmax.f32 %v954, 0.0
      %v963 = vrsqrt.pop %v955
      %v964 = vmul.f32 %v963, %v955
      %v965 = vmul.f32 %v964, %v963
      %v966 = vmul.f32 0.5, %v965
      %v967 = vsub.f32 1.5, %v966
      %v968 = vmul.f32 %v963, %v967
      %v969 = vmul.f32 %v955, %v968
      %vm970 = vcmp.eq.f32.partialorder %v955, inf
      %v971 = vsel %vm970, %v955, %v969
      %vm972 = vcmp.eq.f32.partialorder %v955, 0.0
      %v973 = vand.u32 %v955, 2147483648
      %v974 = vsel %vm972, %v973, %v971
      %v975 = vrsqrt.pop %v956
      %v976 = vmul.f32 %v975, %v956
      %v977 = vmul.f32 %v976, %v975
      %v978 = vmul.f32 0.5, %v977
      %v979 = vsub.f32 1.5, %v978
      %v980 = vmul.f32 %v975, %v979
      %v981 = vmul.f32 %v956, %v980
      %vm982 = vcmp.eq.f32.partialorder %v956, inf
      %v983 = vsel %vm982, %v956, %v981
      %vm984 = vcmp.eq.f32.partialorder %v956, 0.0
      %v985 = vand.u32 %v956, 2147483648
      %v986 = vsel %vm984, %v985, %v983
      %v987 = vrsqrt.pop %v957
      %v988 = vmul.f32 %v987, %v957
      %v989 = vmul.f32 %v988, %v987
      %v990 = vmul.f32 0.5, %v989
      %v991 = vsub.f32 1.5, %v990
      %v992 = vmul.f32 %v987, %v991
      %v993 = vmul.f32 %v957, %v992
      %vm994 = vcmp.eq.f32.partialorder %v957, inf
      %v995 = vsel %vm994, %v957, %v993
      %vm996 = vcmp.eq.f32.partialorder %v957, 0.0
      %v997 = vand.u32 %v957, 2147483648
      %v998 = vsel %vm996, %v997, %v995
      %v999 = vrsqrt.pop %v958
      %v1000 = vmul.f32 %v999, %v958
      %v1001 = vmul.f32 %v1000, %v999
      %v1002 = vmul.f32 0.5, %v1001
      %v1003 = vsub.f32 1.5, %v1002
      %v1004 = vmul.f32 %v999, %v1003
      %v1005 = vmul.f32 %v958, %v1004
      %vm1006 = vcmp.eq.f32.partialorder %v958, inf
      %v1007 = vsel %vm1006, %v958, %v1005
      %vm1008 = vcmp.eq.f32.partialorder %v958, 0.0
      %v1009 = vand.u32 %v958, 2147483648
      %v1010 = vsel %vm1008, %v1009, %v1007
      %v1011 = vrsqrt.pop %v959
      %v1012 = vmul.f32 %v1011, %v959
      %v1013 = vmul.f32 %v1012, %v1011
      %v1014 = vmul.f32 0.5, %v1013
      %v1015 = vsub.f32 1.5, %v1014
      %v1016 = vmul.f32 %v1011, %v1015
      %v1017 = vmul.f32 %v959, %v1016
      %vm1018 = vcmp.eq.f32.partialorder %v959, inf
      %v1019 = vsel %vm1018, %v959, %v1017
      %vm1020 = vcmp.eq.f32.partialorder %v959, 0.0
      %v1021 = vand.u32 %v959, 2147483648
      %v1022 = vsel %vm1020, %v1021, %v1019
      %v1023 = vrsqrt.pop %v960
      %v1024 = vmul.f32 %v1023, %v960
      %v1025 = vmul.f32 %v1024, %v1023
      %v1026 = vmul.f32 0.5, %v1025
      %v1027 = vsub.f32 1.5, %v1026
      %v1028 = vmul.f32 %v1023, %v1027
      %v1029 = vmul.f32 %v960, %v1028
      %vm1030 = vcmp.eq.f32.partialorder %v960, inf
      %v1031 = vsel %vm1030, %v960, %v1029
      %vm1032 = vcmp.eq.f32.partialorder %v960, 0.0
      %v1033 = vand.u32 %v960, 2147483648
      %v1034 = vsel %vm1032, %v1033, %v1031
      %v1035 = vrsqrt.pop %v961
      %v1036 = vmul.f32 %v1035, %v961
      %v1037 = vmul.f32 %v1036, %v1035
      %v1038 = vmul.f32 0.5, %v1037
      %v1039 = vsub.f32 1.5, %v1038
      %v1040 = vmul.f32 %v1035, %v1039
      %v1041 = vmul.f32 %v961, %v1040
      %vm1042 = vcmp.eq.f32.partialorder %v961, inf
      %v1043 = vsel %vm1042, %v961, %v1041
      %vm1044 = vcmp.eq.f32.partialorder %v961, 0.0
      %v1045 = vand.u32 %v961, 2147483648
      %v1046 = vsel %vm1044, %v1045, %v1043
      %v1047 = vrsqrt.pop %v962
      %v1048 = vmul.f32 %v1047, %v962
      %v1049 = vmul.f32 %v1048, %v1047
      %v1050 = vmul.f32 0.5, %v1049
      %v1051 = vsub.f32 1.5, %v1050
      %v1052 = vmul.f32 %v1047, %v1051
      %v1053 = vmul.f32 %v962, %v1052
      %vm1054 = vcmp.eq.f32.partialorder %v962, inf
      %v1055 = vsel %vm1054, %v962, %v1053
      %vm1056 = vcmp.eq.f32.partialorder %v962, 0.0
      %v1057 = vand.u32 %v962, 2147483648
      %v1058 = vsel %vm1056, %v1057, %v1055
      %v1059 = vsub.f32 0.0, %v974
      %v1060 = vsub.f32 0.0, %v986
      %v1061 = vsub.f32 0.0, %v998
      %v1062 = vsub.f32 0.0, %v1010
      %v1063 = vsub.f32 0.0, %v1022
      %v1064 = vsub.f32 0.0, %v1034
      %v1065 = vsub.f32 0.0, %v1046
      %v1066 = vsub.f32 0.0, %v1058
      %v1067 = vmul.f32 %v1059, 2.0
      %v1068 = vmul.f32 %v1060, 2.0
      %v1069 = vmul.f32 %v1061, 2.0
      %v1070 = vmul.f32 %v1062, 2.0
      %v1071 = vmul.f32 %v1063, 2.0
      %v1072 = vmul.f32 %v1064, 2.0
      %v1073 = vmul.f32 %v1065, 2.0
      %v1074 = vmul.f32 %v1066, 2.0
      %v1075 = vmul.f32 %v1067, 1.442695
      %v1076 = vpow.pop %v1075
      %v1077 = vmul.f32 %v1068, 1.442695
      %v1078 = vpow.pop %v1077
      %v1079 = vmul.f32 %v1069, 1.442695
      %v1080 = vpow.pop %v1079
      %v1081 = vmul.f32 %v1070, 1.442695
      %v1082 = vpow.pop %v1081
      %v1083 = vmul.f32 %v1071, 1.442695
      %v1084 = vpow.pop %v1083
      %v1085 = vmul.f32 %v1072, 1.442695
      %v1086 = vpow.pop %v1085
      %v1087 = vmul.f32 %v1073, 1.442695
      %v1088 = vpow.pop %v1087
      %v1089 = vmul.f32 %v1074, 1.442695
      %v1090 = vpow.pop %v1089
      %vm1091 = vcmask 48128
      %v1092 = vsel %vm1091, %v1076, 0.0
      %v1093 = vsel %vm1091, %v1078, 0.0
      %v1094 = vsel %vm1091, %v1080, 0.0
      %v1095 = vsel %vm1091, %v1082, 0.0
      %v1096 = vsel %vm1091, %v1084, 0.0
      %v1097 = vsel %vm1091, %v1086, 0.0
      %v1098 = vsel %vm1091, %v1088, 0.0
      %v1099 = vsel %vm1091, %v1090, 0.0
      %vm1100 = vcmask 1045504
      %v1101 = vsel %vm1100, %v1092, 0.0
      %v1102 = vsel %vm1100, %v1093, 0.0
      %v1103 = vsel %vm1100, %v1094, 0.0
      %v1104 = vsel %vm1100, %v1095, 0.0
      %v1105 = vsel %vm1100, %v1096, 0.0
      %v1106 = vsel %vm1100, %v1097, 0.0
      %v1107 = vsel %vm1100, %v1098, 0.0
      %v1108 = vsel %vm1100, %v1099, 0.0
      %v1109 = vpack.c.bf16 %v1101, %v1101
      %v1110 = vpack.c.bf16 0.0, 0.0
      %v1111 = vpack.c.bf16 %v1102, %v1102
      %v1112 = vpack.c.bf16 %v1103, %v1103
      %v1113 = vpack.c.bf16 %v1104, %v1104
      %v1114 = vpack.c.bf16 %v1105, %v1105
      %v1115 = vpack.c.bf16 %v1106, %v1106
      %v1116 = vpack.c.bf16 %v1107, %v1107
      %v1117 = vpack.c.bf16 %v1108, %v1108
      %v1118 = vsel %vm1091, %v408, 0.0
      %v1119 = vsel %vm1091, %v440, 0.0
      %v1120 = vsel %vm1091, %v472, 0.0
      %v1121 = vsel %vm1091, %v504, 0.0
      %v1122 = vsel %vm1091, %v536, 0.0
      %v1123 = vsel %vm1091, %v568, 0.0
      %v1124 = vsel %vm1091, %v600, 0.0
      %v1125 = vsel %vm1091, %v632, 0.0
      %v1126 = vld [vmem:[%s1] sm:$0xf]
      %v1127 = vmul.f32 %v1118, %v1126
      %v1128 = vmul.f32 %v1119, %v1126
      %v1129 = vmul.f32 %v1120, %v1126
      %v1130 = vmul.f32 %v1121, %v1126
      %v1131 = vmul.f32 %v1122, %v1126
      %v1132 = vmul.f32 %v1123, %v1126
      %v1133 = vmul.f32 %v1124, %v1126
      %v1134 = vmul.f32 %v1125, %v1126
      %v1135 = vld [vmem:[%s2] sm:$0xf]
      %v1136 = vadd.f32 %v1127, %v1135
      %v1137 = vadd.f32 %v1128, %v1135
      %v1138 = vadd.f32 %v1129, %v1135
      %v1139 = vadd.f32 %v1130, %v1135
      %v1140 = vadd.f32 %v1131, %v1135
      %v1141 = vadd.f32 %v1132, %v1135
      %v1142 = vadd.f32 %v1133, %v1135
      %v1143 = vadd.f32 %v1134, %v1135
      %v1144 = vpack.c.bf16 %v1136, %v1136
      %v1145 = vpack.c.bf16 %v1137, %v1137
      %v1146 = vpack.c.bf16 %v1138, %v1138
      %v1147 = vpack.c.bf16 %v1139, %v1139
      %v1148 = vpack.c.bf16 %v1140, %v1140
      %v1149 = vpack.c.bf16 %v1141, %v1141
      %v1150 = vpack.c.bf16 %v1142, %v1142
      %v1151 = vpack.c.bf16 %v1143, %v1143
      %v1152 = vld [vmem:[%s3] sm:$0xf]
      %v1153 = vld [vmem:[%s4] sm:$0xff]
      %v1162 = vrot.slane %v1144, 6
      %v1163 = vrot.slane %v1145, 6
      %v1164 = vrot.slane %v1146, 6
      %v1165 = vrot.slane %v1147, 6
      %v1166 = vrot.slane %v1148, 6
      %v1167 = vrot.slane %v1149, 6
      %v1168 = vrot.slane %v1150, 6
      %v1169 = vrot.slane %v1151, 6
      %v1171 = vrot.slane %v1145, 4
      %v1172 = vrot.slane %v1146, 4
      %v1173 = vrot.slane %v1147, 4
      %v1174 = vrot.slane %v1148, 4
      %v1175 = vrot.slane %v1149, 4
      %v1176 = vrot.slane %v1150, 4
      %v1177 = vrot.slane %v1151, 4
      %v1178 = vrot.slane 0, 4
      %vm1179 = vcmask 1041408
      %v1182 = vsel %vm1179, 0, %v1162
      %v1185 = vsel %vm1179, %v1144, %v1163
      %v1188 = vsel %vm1179, %v1145, %v1164
      %v1191 = vsel %vm1179, %v1146, %v1165
      %v1194 = vsel %vm1179, %v1147, %v1166
      %v1197 = vsel %vm1179, %v1148, %v1167
      %v1200 = vsel %vm1179, %v1149, %v1168
      %v1203 = vsel %vm1179, %v1150, %v1169
      %vm1204 = vcmask 1043456
      %v1206 = vsel %vm1204, %v1182, %v1171
      %v1208 = vsel %vm1204, %v1185, %v1172
      %v1210 = vsel %vm1204, %v1188, %v1173
      %v1212 = vsel %vm1204, %v1191, %v1174
      %v1214 = vsel %vm1204, %v1194, %v1175
      %v1216 = vsel %vm1204, %v1197, %v1176
      %v1218 = vsel %vm1204, %v1200, %v1177
      %v1220 = vsel %vm1204, %v1203, %v1178
      %1222 = vset.pattern.permute.xlu0 0
      %1223 = vperm.xlu0 %1222, %v1153
      %v1224 = vpop.permute.xlu0 %1223
      %vm1226 = vcmask 97280
      %v1228 = vsel %vm1226, %v1152, 0
      %v1230 = vsel %vm1100, %v1206, 0
      %1232 = vmatpush.bf16.msra.mxu0 0
      %1233 = vmatpush.bf16.msra.mxu0 0
      %1234 = vmatpush.bf16.msra.mxu0 0
      %1235 = vmatpush.bf16.msra.mxu0 0
      %1236 = vmatpush.bf16.msra.mxu0 0
      %1237 = vmatpush.bf16.msra.mxu0 0
      %1238 = vmatpush.bf16.msra.mxu0 0
      %1239 = vmatpush.bf16.msra.mxu0 %v1230
      %1240 = vmatmul.bf16.gmra.mxu0 %v1228
      %v1241 = vpop.f32.mrf.mxu0
      %v1242 = vadd.f32 %v1224, %v1241
      %v1243 = vpop.f32.mrf.mxu0
      %1244 = vdwg.mxu0
      %v1245 = vsel %vm1100, %v1208, 0
      %1247 = vmatpush.bf16.msra.mxu0 0
      %1248 = vmatpush.bf16.msra.mxu0 0
      %1249 = vmatpush.bf16.msra.mxu0 0
      %1250 = vmatpush.bf16.msra.mxu0 0
      %1251 = vmatpush.bf16.msra.mxu0 0
      %1252 = vmatpush.bf16.msra.mxu0 0
      %1253 = vmatpush.bf16.msra.mxu0 0
      %1254 = vmatpush.bf16.msra.mxu0 %v1245
      %1255 = vmatmul.bf16.gmra.mxu0 %v1228
      %v1256 = vpop.f32.mrf.mxu0
      %v1257 = vadd.f32 %v1224, %v1256
      %v1258 = vpop.f32.mrf.mxu0
      %1259 = vdwg.mxu0
      %v1260 = vsel %vm1100, %v1210, 0
      %1262 = vmatpush.bf16.msra.mxu0 0
      %1263 = vmatpush.bf16.msra.mxu0 0
      %1264 = vmatpush.bf16.msra.mxu0 0
      %1265 = vmatpush.bf16.msra.mxu0 0
      %1266 = vmatpush.bf16.msra.mxu0 0
      %1267 = vmatpush.bf16.msra.mxu0 0
      %1268 = vmatpush.bf16.msra.mxu0 0
      %1269 = vmatpush.bf16.msra.mxu0 %v1260
      %1270 = vmatmul.bf16.gmra.mxu0 %v1228
      %v1271 = vpop.f32.mrf.mxu0
      %v1272 = vadd.f32 %v1224, %v1271
      %v1273 = vpop.f32.mrf.mxu0
      %1274 = vdwg.mxu0
      %v1275 = vsel %vm1100, %v1212, 0
      %1277 = vmatpush.bf16.msra.mxu0 0
      %1278 = vmatpush.bf16.msra.mxu0 0
      %1279 = vmatpush.bf16.msra.mxu0 0
      %1280 = vmatpush.bf16.msra.mxu0 0
      %1281 = vmatpush.bf16.msra.mxu0 0
      %1282 = vmatpush.bf16.msra.mxu0 0
      %1283 = vmatpush.bf16.msra.mxu0 0
      %1284 = vmatpush.bf16.msra.mxu0 %v1275
      %1285 = vmatmul.bf16.gmra.mxu0 %v1228
      %v1286 = vpop.f32.mrf.mxu0
      %v1287 = vadd.f32 %v1224, %v1286
      %v1288 = vpop.f32.mrf.mxu0
      %1289 = vdwg.mxu0
      %v1290 = vsel %vm1100, %v1214, 0
      %1292 = vmatpush.bf16.msra.mxu0 0
      %1293 = vmatpush.bf16.msra.mxu0 0
      %1294 = vmatpush.bf16.msra.mxu0 0
      %1295 = vmatpush.bf16.msra.mxu0 0
      %1296 = vmatpush.bf16.msra.mxu0 0
      %1297 = vmatpush.bf16.msra.mxu0 0
      %1298 = vmatpush.bf16.msra.mxu0 0
      %1299 = vmatpush.bf16.msra.mxu0 %v1290
      %1300 = vmatmul.bf16.gmra.mxu0 %v1228
      %v1301 = vpop.f32.mrf.mxu0
      %v1302 = vadd.f32 %v1224, %v1301
      %v1303 = vpop.f32.mrf.mxu0
      %1304 = vdwg.mxu0
      %v1305 = vsel %vm1100, %v1216, 0
      %1307 = vmatpush.bf16.msra.mxu0 0
      %1308 = vmatpush.bf16.msra.mxu0 0
      %1309 = vmatpush.bf16.msra.mxu0 0
      %1310 = vmatpush.bf16.msra.mxu0 0
      %1311 = vmatpush.bf16.msra.mxu0 0
      %1312 = vmatpush.bf16.msra.mxu0 0
      %1313 = vmatpush.bf16.msra.mxu0 0
      %1314 = vmatpush.bf16.msra.mxu0 %v1305
      %1315 = vmatmul.bf16.gmra.mxu0 %v1228
      %v1316 = vpop.f32.mrf.mxu0
      %v1317 = vadd.f32 %v1224, %v1316
      %v1318 = vpop.f32.mrf.mxu0
      %1319 = vdwg.mxu0
      %v1320 = vsel %vm1100, %v1218, 0
      %1322 = vmatpush.bf16.msra.mxu0 0
      %1323 = vmatpush.bf16.msra.mxu0 0
      %1324 = vmatpush.bf16.msra.mxu0 0
      %1325 = vmatpush.bf16.msra.mxu0 0
      %1326 = vmatpush.bf16.msra.mxu0 0
      %1327 = vmatpush.bf16.msra.mxu0 0
      %1328 = vmatpush.bf16.msra.mxu0 0
      %1329 = vmatpush.bf16.msra.mxu0 %v1320
      %1330 = vmatmul.bf16.gmra.mxu0 %v1228
      %v1331 = vpop.f32.mrf.mxu0
      %v1332 = vadd.f32 %v1224, %v1331
      %v1333 = vpop.f32.mrf.mxu0
      %1334 = vdwg.mxu0
      %v1335 = vsel %vm1100, %v1220, 0
      %1337 = vmatpush.bf16.msra.mxu0 0
      %1338 = vmatpush.bf16.msra.mxu0 0
      %1339 = vmatpush.bf16.msra.mxu0 0
      %1340 = vmatpush.bf16.msra.mxu0 0
      %1341 = vmatpush.bf16.msra.mxu0 0
      %1342 = vmatpush.bf16.msra.mxu0 0
      %1343 = vmatpush.bf16.msra.mxu0 0
      %1344 = vmatpush.bf16.msra.mxu0 %v1335
      %1345 = vmatmul.bf16.gmra.mxu0 %v1228
      %v1346 = vpop.f32.mrf.mxu0
      %v1347 = vadd.f32 %v1224, %v1346
      %v1348 = vpop.f32.mrf.mxu0
      %1349 = vdwg.mxu0
      %v1350 = vmax.f32 %v1242, 0.0
      %v1351 = vmax.f32 %v1257, 0.0
      %v1352 = vmax.f32 %v1272, 0.0
      %v1353 = vmax.f32 %v1287, 0.0
      %v1354 = vmax.f32 %v1302, 0.0
      %v1355 = vmax.f32 %v1317, 0.0
      %v1356 = vmax.f32 %v1332, 0.0
      %v1357 = vmax.f32 %v1347, 0.0
      %v1358 = vpack.c.bf16 %v1350, %v1350
      %v1359 = vpack.c.bf16 %v1351, %v1351
      %v1360 = vpack.c.bf16 %v1352, %v1352
      %v1361 = vpack.c.bf16 %v1353, %v1353
      %v1362 = vpack.c.bf16 %v1354, %v1354
      %v1363 = vpack.c.bf16 %v1355, %v1355
      %v1364 = vpack.c.bf16 %v1356, %v1356
      %v1365 = vpack.c.bf16 %v1357, %v1357
      %v1368 = vunpack.c.l.b16 %v1109
      %v1369 = vunpack.c.l.b16 %v1110
      %v1370 = vpack.c.b16 %v1369, %v1368
      %v1371 = vpack.c.b16 %v1369, %v1369
      %1374 = vmatpush.bf16.msra.mxu0 %v1371
      %1375 = vmatpush.bf16.msra.mxu0 %v1371
      %1376 = vmatpush.bf16.msra.mxu0 %v1371
      %1377 = vmatpush.bf16.msra.mxu0 %v1371
      %1378 = vmatpush.bf16.msra.mxu0 %v1371
      %1379 = vmatpush.bf16.msra.mxu0 %v1371
      %1380 = vmatpush.bf16.msra.mxu0 %v1371
      %1381 = vmatpush.bf16.msra.mxu0 %v1370
      %1382 = vmatmul.bf16.gmra.mxu0 %v1358
      %v1383 = vpop.f32.mrf.mxu0
      %v1384 = vadd.f32 0.0, %v1383
      %v1385 = vpop.f32.mrf.mxu0
      %1386 = vdwg.mxu0
      %v1388 = vunpack.c.l.b16 %v1111
      %v1389 = vpack.c.b16 %v1369, %v1388
      %1391 = vmatpush.bf16.msra.mxu0 %v1371
      %1392 = vmatpush.bf16.msra.mxu0 %v1371
      %1393 = vmatpush.bf16.msra.mxu0 %v1371
      %1394 = vmatpush.bf16.msra.mxu0 %v1371
      %1395 = vmatpush.bf16.msra.mxu0 %v1371
      %1396 = vmatpush.bf16.msra.mxu0 %v1371
      %1397 = vmatpush.bf16.msra.mxu0 %v1371
      %1398 = vmatpush.bf16.msra.mxu0 %v1389
      %1399 = vmatmul.bf16.gmra.mxu0 %v1359
      %v1400 = vpop.f32.mrf.mxu0
      %v1401 = vadd.f32 0.0, %v1400
      %v1402 = vpop.f32.mrf.mxu0
      %1403 = vdwg.mxu0
      %v1405 = vunpack.c.l.b16 %v1112
      %v1406 = vpack.c.b16 %v1369, %v1405
      %1408 = vmatpush.bf16.msra.mxu0 %v1371
      %1409 = vmatpush.bf16.msra.mxu0 %v1371
      %1410 = vmatpush.bf16.msra.mxu0 %v1371
      %1411 = vmatpush.bf16.msra.mxu0 %v1371
      %1412 = vmatpush.bf16.msra.mxu0 %v1371
      %1413 = vmatpush.bf16.msra.mxu0 %v1371
      %1414 = vmatpush.bf16.msra.mxu0 %v1371
      %1415 = vmatpush.bf16.msra.mxu0 %v1406
      %1416 = vmatmul.bf16.gmra.mxu0 %v1360
      %v1417 = vpop.f32.mrf.mxu0
      %v1418 = vadd.f32 0.0, %v1417
      %v1419 = vpop.f32.mrf.mxu0
      %1420 = vdwg.mxu0
      %v1422 = vunpack.c.l.b16 %v1113
      %v1423 = vpack.c.b16 %v1369, %v1422
      %1425 = vmatpush.bf16.msra.mxu0 %v1371
      %1426 = vmatpush.bf16.msra.mxu0 %v1371
      %1427 = vmatpush.bf16.msra.mxu0 %v1371
      %1428 = vmatpush.bf16.msra.mxu0 %v1371
      %1429 = vmatpush.bf16.msra.mxu0 %v1371
      %1430 = vmatpush.bf16.msra.mxu0 %v1371
      %1431 = vmatpush.bf16.msra.mxu0 %v1371
      %1432 = vmatpush.bf16.msra.mxu0 %v1423
      %1433 = vmatmul.bf16.gmra.mxu0 %v1361
      %v1434 = vpop.f32.mrf.mxu0
      %v1435 = vadd.f32 0.0, %v1434
      %v1436 = vpop.f32.mrf.mxu0
      %1437 = vdwg.mxu0
      %v1439 = vunpack.c.l.b16 %v1114
      %v1440 = vpack.c.b16 %v1369, %v1439
      %1442 = vmatpush.bf16.msra.mxu0 %v1371
      %1443 = vmatpush.bf16.msra.mxu0 %v1371
      %1444 = vmatpush.bf16.msra.mxu0 %v1371
      %1445 = vmatpush.bf16.msra.mxu0 %v1371
      %1446 = vmatpush.bf16.msra.mxu0 %v1371
      %1447 = vmatpush.bf16.msra.mxu0 %v1371
      %1448 = vmatpush.bf16.msra.mxu0 %v1371
      %1449 = vmatpush.bf16.msra.mxu0 %v1440
      %1450 = vmatmul.bf16.gmra.mxu0 %v1362
      %v1451 = vpop.f32.mrf.mxu0
      %v1452 = vadd.f32 0.0, %v1451
      %v1453 = vpop.f32.mrf.mxu0
      %1454 = vdwg.mxu0
      %v1456 = vunpack.c.l.b16 %v1115
      %v1457 = vpack.c.b16 %v1369, %v1456
      %1459 = vmatpush.bf16.msra.mxu0 %v1371
      %1460 = vmatpush.bf16.msra.mxu0 %v1371
      %1461 = vmatpush.bf16.msra.mxu0 %v1371
      %1462 = vmatpush.bf16.msra.mxu0 %v1371
      %1463 = vmatpush.bf16.msra.mxu0 %v1371
      %1464 = vmatpush.bf16.msra.mxu0 %v1371
      %1465 = vmatpush.bf16.msra.mxu0 %v1371
      %1466 = vmatpush.bf16.msra.mxu0 %v1457
      %1467 = vmatmul.bf16.gmra.mxu0 %v1363
      %v1468 = vpop.f32.mrf.mxu0
      %v1469 = vadd.f32 0.0, %v1468
      %v1470 = vpop.f32.mrf.mxu0
      %1471 = vdwg.mxu0
      %v1473 = vunpack.c.l.b16 %v1116
      %v1474 = vpack.c.b16 %v1369, %v1473
      %1476 = vmatpush.bf16.msra.mxu0 %v1371
      %1477 = vmatpush.bf16.msra.mxu0 %v1371
      %1478 = vmatpush.bf16.msra.mxu0 %v1371
      %1479 = vmatpush.bf16.msra.mxu0 %v1371
      %1480 = vmatpush.bf16.msra.mxu0 %v1371
      %1481 = vmatpush.bf16.msra.mxu0 %v1371
      %1482 = vmatpush.bf16.msra.mxu0 %v1371
      %1483 = vmatpush.bf16.msra.mxu0 %v1474
      %1484 = vmatmul.bf16.gmra.mxu0 %v1364
      %v1485 = vpop.f32.mrf.mxu0
      %v1486 = vadd.f32 0.0, %v1485
      %v1487 = vpop.f32.mrf.mxu0
      %1488 = vdwg.mxu0
      %v1490 = vunpack.c.l.b16 %v1117
      %v1491 = vpack.c.b16 %v1369, %v1490
      %1493 = vmatpush.bf16.msra.mxu0 %v1371
      %1494 = vmatpush.bf16.msra.mxu0 %v1371
      %1495 = vmatpush.bf16.msra.mxu0 %v1371
      %1496 = vmatpush.bf16.msra.mxu0 %v1371
      %1497 = vmatpush.bf16.msra.mxu0 %v1371
      %1498 = vmatpush.bf16.msra.mxu0 %v1371
      %1499 = vmatpush.bf16.msra.mxu0 %v1371
      %1500 = vmatpush.bf16.msra.mxu0 %v1491
      %1501 = vmatmul.bf16.gmra.mxu0 %v1365
      %v1502 = vpop.f32.mrf.mxu0
      %v1503 = vadd.f32 0.0, %v1502
      %v1504 = vpop.f32.mrf.mxu0
      %1505 = vdwg.mxu0
      %v1506 = vpack.c.bf16 %v1384, %v1384
      %v1507 = vpack.c.bf16 %v1401, %v1401
      %v1508 = vpack.c.bf16 %v1418, %v1418
      %v1509 = vpack.c.bf16 %v1435, %v1435
      %v1510 = vpack.c.bf16 %v1452, %v1452
      %v1511 = vpack.c.bf16 %v1469, %v1469
      %v1512 = vpack.c.bf16 %v1486, %v1486
      %v1513 = vpack.c.bf16 %v1503, %v1503
      %v1514 = vld [vmem:[%s5] sm:$0xf]
      %v1515 = vld [vmem:[%s6] sm:$0xff]
      %v1524 = vrot.slane %v1506, 4
      %v1525 = vrot.slane %v1507, 4
      %v1526 = vrot.slane %v1508, 4
      %v1527 = vrot.slane %v1509, 4
      %v1528 = vrot.slane %v1510, 4
      %v1529 = vrot.slane %v1511, 4
      %v1530 = vrot.slane %v1512, 4
      %v1531 = vrot.slane %v1513, 4
      %v1533 = vsel %vm1204, 0, %v1524
      %v1537 = vsel %vm1204, %v1506, %v1525
      %v1541 = vsel %vm1204, %v1507, %v1526
      %v1545 = vsel %vm1204, %v1508, %v1527
      %v1549 = vsel %vm1204, %v1509, %v1528
      %v1553 = vsel %vm1204, %v1510, %v1529
      %v1557 = vsel %vm1204, %v1511, %v1530
      %v1561 = vsel %vm1204, %v1512, %v1531
      %1564 = vset.pattern.permute.xlu0 0
      %1565 = vperm.xlu0 %1564, %v1515
      %v1566 = vpop.permute.xlu0 %1565
      %vm1568 = vcmask 195584
      %v1570 = vsel %vm1568, %v1514, 0
      %v1572 = vsel %vm1204, %v1507, 0
      %1574 = vmatpush.bf16.msra.mxu0 0
      %1575 = vmatpush.bf16.msra.mxu0 0
      %1576 = vmatpush.bf16.msra.mxu0 0
      %1577 = vmatpush.bf16.msra.mxu0 0
      %1578 = vmatpush.bf16.msra.mxu0 0
      %1579 = vmatpush.bf16.msra.mxu0 0
      %1580 = vmatpush.bf16.msra.mxu0 %v1572
      %1581 = vmatpush.bf16.msra.mxu0 %v1533
      %1582 = vmatmul.bf16.gmra.mxu0 %v1570
      %v1583 = vpop.f32.mrf.mxu0
      %v1584 = vadd.f32 %v1566, %v1583
      %v1585 = vpop.f32.mrf.mxu0
      %1586 = vdwg.mxu0
      %v1587 = vsel %vm1204, %v1508, 0
      %1589 = vmatpush.bf16.msra.mxu0 0
      %1590 = vmatpush.bf16.msra.mxu0 0
      %1591 = vmatpush.bf16.msra.mxu0 0
      %1592 = vmatpush.bf16.msra.mxu0 0
      %1593 = vmatpush.bf16.msra.mxu0 0
      %1594 = vmatpush.bf16.msra.mxu0 0
      %1595 = vmatpush.bf16.msra.mxu0 %v1587
      %1596 = vmatpush.bf16.msra.mxu0 %v1537
      %1597 = vmatmul.bf16.gmra.mxu0 %v1570
      %v1598 = vpop.f32.mrf.mxu0
      %v1599 = vadd.f32 %v1566, %v1598
      %v1600 = vpop.f32.mrf.mxu0
      %1601 = vdwg.mxu0
      %v1602 = vsel %vm1204, %v1509, 0
      %1604 = vmatpush.bf16.msra.mxu0 0
      %1605 = vmatpush.bf16.msra.mxu0 0
      %1606 = vmatpush.bf16.msra.mxu0 0
      %1607 = vmatpush.bf16.msra.mxu0 0
      %1608 = vmatpush.bf16.msra.mxu0 0
      %1609 = vmatpush.bf16.msra.mxu0 0
      %1610 = vmatpush.bf16.msra.mxu0 %v1602
      %1611 = vmatpush.bf16.msra.mxu0 %v1541
      %1612 = vmatmul.bf16.gmra.mxu0 %v1570
      %v1613 = vpop.f32.mrf.mxu0
      %v1614 = vadd.f32 %v1566, %v1613
      %v1615 = vpop.f32.mrf.mxu0
      %1616 = vdwg.mxu0
      %v1617 = vsel %vm1204, %v1510, 0
      %1619 = vmatpush.bf16.msra.mxu0 0
      %1620 = vmatpush.bf16.msra.mxu0 0
      %1621 = vmatpush.bf16.msra.mxu0 0
      %1622 = vmatpush.bf16.msra.mxu0 0
      %1623 = vmatpush.bf16.msra.mxu0 0
      %1624 = vmatpush.bf16.msra.mxu0 0
      %1625 = vmatpush.bf16.msra.mxu0 %v1617
      %1626 = vmatpush.bf16.msra.mxu0 %v1545
      %1627 = vmatmul.bf16.gmra.mxu0 %v1570
      %v1628 = vpop.f32.mrf.mxu0
      %v1629 = vadd.f32 %v1566, %v1628
      %v1630 = vpop.f32.mrf.mxu0
      %1631 = vdwg.mxu0
      %v1632 = vsel %vm1204, %v1511, 0
      %1634 = vmatpush.bf16.msra.mxu0 0
      %1635 = vmatpush.bf16.msra.mxu0 0
      %1636 = vmatpush.bf16.msra.mxu0 0
      %1637 = vmatpush.bf16.msra.mxu0 0
      %1638 = vmatpush.bf16.msra.mxu0 0
      %1639 = vmatpush.bf16.msra.mxu0 0
      %1640 = vmatpush.bf16.msra.mxu0 %v1632
      %1641 = vmatpush.bf16.msra.mxu0 %v1549
      %1642 = vmatmul.bf16.gmra.mxu0 %v1570
      %v1643 = vpop.f32.mrf.mxu0
      %v1644 = vadd.f32 %v1566, %v1643
      %v1645 = vpop.f32.mrf.mxu0
      %1646 = vdwg.mxu0
      %v1647 = vsel %vm1204, %v1512, 0
      %1649 = vmatpush.bf16.msra.mxu0 0
      %1650 = vmatpush.bf16.msra.mxu0 0
      %1651 = vmatpush.bf16.msra.mxu0 0
      %1652 = vmatpush.bf16.msra.mxu0 0
      %1653 = vmatpush.bf16.msra.mxu0 0
      %1654 = vmatpush.bf16.msra.mxu0 0
      %1655 = vmatpush.bf16.msra.mxu0 %v1647
      %1656 = vmatpush.bf16.msra.mxu0 %v1553
      %1657 = vmatmul.bf16.gmra.mxu0 %v1570
      %v1658 = vpop.f32.mrf.mxu0
      %v1659 = vadd.f32 %v1566, %v1658
      %v1660 = vpop.f32.mrf.mxu0
      %1661 = vdwg.mxu0
      %v1663 = vsel %vm1204, %v1513, 0
      %1665 = vmatpush.bf16.msra.mxu0 0
      %1666 = vmatpush.bf16.msra.mxu0 0
      %1667 = vmatpush.bf16.msra.mxu0 0
      %1668 = vmatpush.bf16.msra.mxu0 0
      %1669 = vmatpush.bf16.msra.mxu0 0
      %1670 = vmatpush.bf16.msra.mxu0 0
      %1671 = vmatpush.bf16.msra.mxu0 %v1663
      %1672 = vmatpush.bf16.msra.mxu0 %v1557
      %1673 = vmatmul.bf16.gmra.mxu0 %v1570
      %v1674 = vpop.f32.mrf.mxu0
      %v1675 = vadd.f32 %v1566, %v1674
      %v1676 = vpop.f32.mrf.mxu0
      %1677 = vdwg.mxu0
      %v1678 = vsel %vm1204, 0, 0
      %1680 = vmatpush.bf16.msra.mxu0 0
      %1681 = vmatpush.bf16.msra.mxu0 0
      %1682 = vmatpush.bf16.msra.mxu0 0
      %1683 = vmatpush.bf16.msra.mxu0 0
      %1684 = vmatpush.bf16.msra.mxu0 0
      %1685 = vmatpush.bf16.msra.mxu0 0
      %1686 = vmatpush.bf16.msra.mxu0 %v1678
      %1687 = vmatpush.bf16.msra.mxu0 %v1561
      %1688 = vmatmul.bf16.gmra.mxu0 %v1570
      %v1689 = vpop.f32.mrf.mxu0
      %v1690 = vadd.f32 %v1566, %v1689
      %v1691 = vpop.f32.mrf.mxu0
      %1692 = vdwg.mxu0
      %v1693 = vmax.f32 %v1584, 0.0
      %v1694 = vmax.f32 %v1599, 0.0
      %v1695 = vmax.f32 %v1614, 0.0
      %v1696 = vmax.f32 %v1629, 0.0
      %v1697 = vmax.f32 %v1644, 0.0
      %v1698 = vmax.f32 %v1659, 0.0
      %v1699 = vmax.f32 %v1675, 0.0
      %v1700 = vmax.f32 %v1690, 0.0
      %v1701 = vpack.c.bf16 %v1693, %v1693
      %v1702 = vpack.c.bf16 %v1694, %v1694
      %v1703 = vpack.c.bf16 %v1695, %v1695
      %v1704 = vpack.c.bf16 %v1696, %v1696
      %v1705 = vpack.c.bf16 %v1697, %v1697
      %v1706 = vpack.c.bf16 %v1698, %v1698
      %v1707 = vpack.c.bf16 %v1699, %v1699
      %v1708 = vpack.c.bf16 %v1700, %v1700
      %1709 = vmatpush.bf16.msra.mxu0 %v1371
      %1710 = vmatpush.bf16.msra.mxu0 %v1371
      %1711 = vmatpush.bf16.msra.mxu0 %v1371
      %1712 = vmatpush.bf16.msra.mxu0 %v1371
      %1713 = vmatpush.bf16.msra.mxu0 %v1371
      %1714 = vmatpush.bf16.msra.mxu0 %v1371
      %1715 = vmatpush.bf16.msra.mxu0 %v1371
      %1716 = vmatpush.bf16.msra.mxu0 %v1370
      %1717 = vmatmul.bf16.gmra.mxu0 %v1701
      %v1718 = vpop.f32.mrf.mxu0
      %v1719 = vadd.f32 0.0, %v1718
      %v1720 = vpop.f32.mrf.mxu0
      %1721 = vdwg.mxu0
      %1722 = vmatpush.bf16.msra.mxu0 %v1371
      %1723 = vmatpush.bf16.msra.mxu0 %v1371
      %1724 = vmatpush.bf16.msra.mxu0 %v1371
      %1725 = vmatpush.bf16.msra.mxu0 %v1371
      %1726 = vmatpush.bf16.msra.mxu0 %v1371
      %1727 = vmatpush.bf16.msra.mxu0 %v1371
      %1728 = vmatpush.bf16.msra.mxu0 %v1371
      %1729 = vmatpush.bf16.msra.mxu0 %v1389
      %1730 = vmatmul.bf16.gmra.mxu0 %v1702
      %v1731 = vpop.f32.mrf.mxu0
      %v1732 = vadd.f32 0.0, %v1731
      %v1733 = vpop.f32.mrf.mxu0
      %1734 = vdwg.mxu0
      %1735 = vmatpush.bf16.msra.mxu0 %v1371
      %1736 = vmatpush.bf16.msra.mxu0 %v1371
      %1737 = vmatpush.bf16.msra.mxu0 %v1371
      %1738 = vmatpush.bf16.msra.mxu0 %v1371
      %1739 = vmatpush.bf16.msra.mxu0 %v1371
      %1740 = vmatpush.bf16.msra.mxu0 %v1371
      %1741 = vmatpush.bf16.msra.mxu0 %v1371
      %1742 = vmatpush.bf16.msra.mxu0 %v1406
      %1743 = vmatmul.bf16.gmra.mxu0 %v1703
      %v1744 = vpop.f32.mrf.mxu0
      %v1745 = vadd.f32 0.0, %v1744
      %v1746 = vpop.f32.mrf.mxu0
      %1747 = vdwg.mxu0
      %1748 = vmatpush.bf16.msra.mxu0 %v1371
      %1749 = vmatpush.bf16.msra.mxu0 %v1371
      %1750 = vmatpush.bf16.msra.mxu0 %v1371
      %1751 = vmatpush.bf16.msra.mxu0 %v1371
      %1752 = vmatpush.bf16.msra.mxu0 %v1371
      %1753 = vmatpush.bf16.msra.mxu0 %v1371
      %1754 = vmatpush.bf16.msra.mxu0 %v1371
      %1755 = vmatpush.bf16.msra.mxu0 %v1423
      %1756 = vmatmul.bf16.gmra.mxu0 %v1704
      %v1757 = vpop.f32.mrf.mxu0
      %v1758 = vadd.f32 0.0, %v1757
      %v1759 = vpop.f32.mrf.mxu0
      %1760 = vdwg.mxu0
      %1761 = vmatpush.bf16.msra.mxu0 %v1371
      %1762 = vmatpush.bf16.msra.mxu0 %v1371
      %1763 = vmatpush.bf16.msra.mxu0 %v1371
      %1764 = vmatpush.bf16.msra.mxu0 %v1371
      %1765 = vmatpush.bf16.msra.mxu0 %v1371
      %1766 = vmatpush.bf16.msra.mxu0 %v1371
      %1767 = vmatpush.bf16.msra.mxu0 %v1371
      %1768 = vmatpush.bf16.msra.mxu0 %v1440
      %1769 = vmatmul.bf16.gmra.mxu0 %v1705
      %v1770 = vpop.f32.mrf.mxu0
      %v1771 = vadd.f32 0.0, %v1770
      %v1772 = vpop.f32.mrf.mxu0
      %1773 = vdwg.mxu0
      %1774 = vmatpush.bf16.msra.mxu0 %v1371
      %1775 = vmatpush.bf16.msra.mxu0 %v1371
      %1776 = vmatpush.bf16.msra.mxu0 %v1371
      %1777 = vmatpush.bf16.msra.mxu0 %v1371
      %1778 = vmatpush.bf16.msra.mxu0 %v1371
      %1779 = vmatpush.bf16.msra.mxu0 %v1371
      %1780 = vmatpush.bf16.msra.mxu0 %v1371
      %1781 = vmatpush.bf16.msra.mxu0 %v1457
      %1782 = vmatmul.bf16.gmra.mxu0 %v1706
      %v1783 = vpop.f32.mrf.mxu0
      %v1784 = vadd.f32 0.0, %v1783
      %v1785 = vpop.f32.mrf.mxu0
      %1786 = vdwg.mxu0
      %1787 = vmatpush.bf16.msra.mxu0 %v1371
      %1788 = vmatpush.bf16.msra.mxu0 %v1371
      %1789 = vmatpush.bf16.msra.mxu0 %v1371
      %1790 = vmatpush.bf16.msra.mxu0 %v1371
      %1791 = vmatpush.bf16.msra.mxu0 %v1371
      %1792 = vmatpush.bf16.msra.mxu0 %v1371
      %1793 = vmatpush.bf16.msra.mxu0 %v1371
      %1794 = vmatpush.bf16.msra.mxu0 %v1474
      %1795 = vmatmul.bf16.gmra.mxu0 %v1707
      %v1796 = vpop.f32.mrf.mxu0
      %v1797 = vadd.f32 0.0, %v1796
      %v1798 = vpop.f32.mrf.mxu0
      %1799 = vdwg.mxu0
      %1800 = vmatpush.bf16.msra.mxu0 %v1371
      %1801 = vmatpush.bf16.msra.mxu0 %v1371
      %1802 = vmatpush.bf16.msra.mxu0 %v1371
      %1803 = vmatpush.bf16.msra.mxu0 %v1371
      %1804 = vmatpush.bf16.msra.mxu0 %v1371
      %1805 = vmatpush.bf16.msra.mxu0 %v1371
      %1806 = vmatpush.bf16.msra.mxu0 %v1371
      %1807 = vmatpush.bf16.msra.mxu0 %v1491
      %1808 = vmatmul.bf16.gmra.mxu0 %v1708
      %v1809 = vpop.f32.mrf.mxu0
      %v1810 = vadd.f32 0.0, %v1809
      %v1811 = vpop.f32.mrf.mxu0
      %1812 = vdwg.mxu0
      %v1813 = vpack.c.bf16 %v1719, %v1719
      %v1814 = vpack.c.bf16 %v1732, %v1732
      %v1815 = vpack.c.bf16 %v1745, %v1745
      %v1816 = vpack.c.bf16 %v1758, %v1758
      %v1817 = vpack.c.bf16 %v1771, %v1771
      %v1818 = vpack.c.bf16 %v1784, %v1784
      %v1819 = vpack.c.bf16 %v1797, %v1797
      %v1820 = vpack.c.bf16 %v1810, %v1810
      %v1821 = vld [vmem:[%s7] sm:$0xf]
      %v1822 = vld [vmem:[%s7 + $0x4] sm:$0xf]
      %v1823 = vld [vmem:[%s8] sm:$0xff]
      %v1824 = vld [vmem:[%s8 + $0x8] sm:$0xff]
      %v1829 = vrot.slane %v1813, 4
      %v1830 = vrot.slane %v1815, 4
      %v1831 = vrot.slane %v1817, 4
      %v1832 = vrot.slane %v1819, 4
      %v1834 = vsel %vm1204, 0, %v1829
      %v1838 = vsel %vm1204, %v1814, %v1830
      %v1842 = vsel %vm1204, %v1816, %v1831
      %v1846 = vsel %vm1204, %v1818, %v1832
      %1849 = vset.pattern.permute.xlu0 0
      %1850 = vperm.xlu0 %1849, %v1823
      %v1851 = vpop.permute.xlu0 %1850
      %1854 = vset.pattern.permute.xlu0 0
      %1855 = vperm.xlu0 %1854, %v1824
      %v1856 = vpop.permute.xlu0 %1855
      %v1860 = vunpack.c.l.b16 %v1821
      %v1861 = vunpack.c.l.b16 %v1822
      %v1862 = vpack.c.b16 %v1861, %v1860
      %v1864 = vsel %vm1568, %v1862, 0
      %v1866 = vsel %vm1204, %v1814, 0
      %1868 = vmatpush.bf16.msra.mxu0 0
      %1869 = vmatpush.bf16.msra.mxu0 0
      %1870 = vmatpush.bf16.msra.mxu0 0
      %1871 = vmatpush.bf16.msra.mxu0 0
      %1872 = vmatpush.bf16.msra.mxu0 0
      %1873 = vmatpush.bf16.msra.mxu0 0
      %1874 = vmatpush.bf16.msra.mxu0 %v1866
      %1875 = vmatpush.bf16.msra.mxu0 %v1834
      %1876 = vmatmul.bf16.gmra.mxu0 %v1864
      %v1877 = vpop.f32.mrf.mxu0
      %v1878 = vadd.f32 %v1851, %v1877
      %v1879 = vpop.f32.mrf.mxu0
      %v1880 = vadd.f32 %v1856, %v1879
      %1881 = vdwg.mxu0
      %v1882 = vsel %vm1204, %v1816, 0
      %1884 = vmatpush.bf16.msra.mxu0 0
      %1885 = vmatpush.bf16.msra.mxu0 0
      %1886 = vmatpush.bf16.msra.mxu0 0
      %1887 = vmatpush.bf16.msra.mxu0 0
      %1888 = vmatpush.bf16.msra.mxu0 0
      %1889 = vmatpush.bf16.msra.mxu0 0
      %1890 = vmatpush.bf16.msra.mxu0 %v1882
      %1891 = vmatpush.bf16.msra.mxu0 %v1838
      %1892 = vmatmul.bf16.gmra.mxu0 %v1864
      %v1893 = vpop.f32.mrf.mxu0
      %v1894 = vadd.f32 %v1851, %v1893
      %v1895 = vpop.f32.mrf.mxu0
      %v1896 = vadd.f32 %v1856, %v1895
      %1897 = vdwg.mxu0
      %v1898 = vsel %vm1204, %v1818, 0
      %1900 = vmatpush.bf16.msra.mxu0 0
      %1901 = vmatpush.bf16.msra.mxu0 0
      %1902 = vmatpush.bf16.msra.mxu0 0
      %1903 = vmatpush.bf16.msra.mxu0 0
      %1904 = vmatpush.bf16.msra.mxu0 0
      %1905 = vmatpush.bf16.msra.mxu0 0
      %1906 = vmatpush.bf16.msra.mxu0 %v1898
      %1907 = vmatpush.bf16.msra.mxu0 %v1842
      %1908 = vmatmul.bf16.gmra.mxu0 %v1864
      %v1909 = vpop.f32.mrf.mxu0
      %v1910 = vadd.f32 %v1851, %v1909
      %v1911 = vpop.f32.mrf.mxu0
      %v1912 = vadd.f32 %v1856, %v1911
      %1913 = vdwg.mxu0
      %v1915 = vsel %vm1204, %v1820, 0
      %1917 = vmatpush.bf16.msra.mxu0 0
      %1918 = vmatpush.bf16.msra.mxu0 0
      %1919 = vmatpush.bf16.msra.mxu0 0
      %1920 = vmatpush.bf16.msra.mxu0 0
      %1921 = vmatpush.bf16.msra.mxu0 0
      %1922 = vmatpush.bf16.msra.mxu0 0
      %1923 = vmatpush.bf16.msra.mxu0 %v1915
      %1924 = vmatpush.bf16.msra.mxu0 %v1846
      %1925 = vmatmul.bf16.gmra.mxu0 %v1864
      %v1926 = vpop.f32.mrf.mxu0
      %v1927 = vadd.f32 %v1851, %v1926
      %v1928 = vpop.f32.mrf.mxu0
      %v1929 = vadd.f32 %v1856, %v1928
      %1930 = vdwg.mxu0
      %v1931 = vmax.f32 %v1878, 0.0
      %v1932 = vmax.f32 %v1880, 0.0
      %v1933 = vmax.f32 %v1894, 0.0
      %v1934 = vmax.f32 %v1896, 0.0
      %v1935 = vmax.f32 %v1910, 0.0
      %v1936 = vmax.f32 %v1912, 0.0
      %v1937 = vmax.f32 %v1927, 0.0
      %v1938 = vmax.f32 %v1929, 0.0
      %v1939 = vpack.c.bf16 %v1931, %v1931
      %v1940 = vpack.c.bf16 %v1932, %v1932
      %v1941 = vpack.c.bf16 %v1933, %v1933
      %v1942 = vpack.c.bf16 %v1934, %v1934
      %v1943 = vpack.c.bf16 %v1935, %v1935
      %v1944 = vpack.c.bf16 %v1936, %v1936
      %v1945 = vpack.c.bf16 %v1937, %v1937
      %v1946 = vpack.c.bf16 %v1938, %v1938
      %v1947 = vunpack.c.l.bf16 %v1109
      %v1948 = vunpack.c.l.bf16 %v1110
      %v1949 = vunpack.c.l.bf16 %v1112
      %v1950 = vunpack.c.l.bf16 %v1114
      %v1951 = vunpack.c.l.bf16 %v1116
      %v1952 = vunpack.c.l.bf16 %v1111
      %v1953 = vunpack.c.l.bf16 %v1113
      %v1954 = vunpack.c.l.bf16 %v1115
      %v1955 = vunpack.c.l.bf16 %v1117
      %v1956 = vadd.f32 %v1947, %v1952
      %v1957 = vadd.f32 %v1948, %v1948
      %v1958 = vadd.f32 %v1949, %v1953
      %v1959 = vadd.f32 %v1950, %v1954
      %v1960 = vadd.f32 %v1951, %v1955
      %v1961 = vpack.c.bf16 %v1956, %v1956
      %v1962 = vpack.c.bf16 %v1957, %v1957
      %v1963 = vpack.c.bf16 %v1958, %v1958
      %v1964 = vpack.c.bf16 %v1959, %v1959
      %v1965 = vpack.c.bf16 %v1960, %v1960
      %v1966 = vunpack.c.l.bf16 %v1961
      %v1967 = vunpack.c.l.bf16 %v1962
      %v1968 = vunpack.c.l.bf16 %v1963
      %v1969 = vunpack.c.l.bf16 %v1964
      %v1970 = vunpack.c.l.bf16 %v1965
      %v1971 = vmul.f32 %v1966, 0.5
      %v1972 = vmul.f32 %v1967, 0.5
      %v1973 = vmul.f32 %v1968, 0.5
      %v1974 = vmul.f32 %v1969, 0.5
      %v1975 = vmul.f32 %v1970, 0.5
      %v1976 = vpack.c.bf16 %v1971, %v1971
      %v1977 = vpack.c.bf16 %v1972, %v1972
      %v1978 = vpack.c.bf16 %v1973, %v1973
      %v1979 = vpack.c.bf16 %v1974, %v1974
      %v1980 = vpack.c.bf16 %v1975, %v1975
      %v1983 = vunpack.c.l.b16 %v1939
      %v1984 = vunpack.c.l.b16 %v1940
      %v1985 = vpack.c.b16 %v1984, %v1983
      %v1989 = vunpack.c.l.b16 %v1976
      %v1990 = vunpack.c.l.b16 %v1977
      %v1991 = vpack.c.b16 %v1990, %v1989
      %v1992 = vpack.c.b16 %v1990, %v1990
      %1995 = vmatpush.bf16.msra.mxu0 %v1992
      %1996 = vmatpush.bf16.msra.mxu0 %v1992
      %1997 = vmatpush.bf16.msra.mxu0 %v1992
      %1998 = vmatpush.bf16.msra.mxu0 %v1992
      %1999 = vmatpush.bf16.msra.mxu0 %v1992
      %2000 = vmatpush.bf16.msra.mxu0 %v1992
      %2001 = vmatpush.bf16.msra.mxu0 %v1992
      %2002 = vmatpush.bf16.msra.mxu0 %v1991
      %2003 = vmatmul.bf16.gmra.mxu0 %v1985
      %v2004 = vpop.f32.mrf.mxu0
      %v2005 = vadd.f32 0.0, %v2004
      %v2006 = vpop.f32.mrf.mxu0
      %v2007 = vadd.f32 0.0, %v2006
      %2008 = vdwg.mxu0
      %v2011 = vunpack.c.l.b16 %v1941
      %v2012 = vunpack.c.l.b16 %v1942
      %v2013 = vpack.c.b16 %v2012, %v2011
      %v2016 = vunpack.c.l.b16 %v1978
      %v2017 = vpack.c.b16 %v1990, %v2016
      %2019 = vmatpush.bf16.msra.mxu0 %v1992
      %2020 = vmatpush.bf16.msra.mxu0 %v1992
      %2021 = vmatpush.bf16.msra.mxu0 %v1992
      %2022 = vmatpush.bf16.msra.mxu0 %v1992
      %2023 = vmatpush.bf16.msra.mxu0 %v1992
      %2024 = vmatpush.bf16.msra.mxu0 %v1992
      %2025 = vmatpush.bf16.msra.mxu0 %v1992
      %2026 = vmatpush.bf16.msra.mxu0 %v2017
      %2027 = vmatmul.bf16.gmra.mxu0 %v2013
      %v2028 = vpop.f32.mrf.mxu0
      %v2029 = vadd.f32 0.0, %v2028
      %v2030 = vpop.f32.mrf.mxu0
      %v2031 = vadd.f32 0.0, %v2030
      %2032 = vdwg.mxu0
      %v2035 = vunpack.c.l.b16 %v1943
      %v2036 = vunpack.c.l.b16 %v1944
      %v2037 = vpack.c.b16 %v2036, %v2035
      %v2040 = vunpack.c.l.b16 %v1979
      %v2041 = vpack.c.b16 %v1990, %v2040
      %2043 = vmatpush.bf16.msra.mxu0 %v1992
      %2044 = vmatpush.bf16.msra.mxu0 %v1992
      %2045 = vmatpush.bf16.msra.mxu0 %v1992
      %2046 = vmatpush.bf16.msra.mxu0 %v1992
      %2047 = vmatpush.bf16.msra.mxu0 %v1992
      %2048 = vmatpush.bf16.msra.mxu0 %v1992
      %2049 = vmatpush.bf16.msra.mxu0 %v1992
      %2050 = vmatpush.bf16.msra.mxu0 %v2041
      %2051 = vmatmul.bf16.gmra.mxu0 %v2037
      %v2052 = vpop.f32.mrf.mxu0
      %v2053 = vadd.f32 0.0, %v2052
      %v2054 = vpop.f32.mrf.mxu0
      %v2055 = vadd.f32 0.0, %v2054
      %2056 = vdwg.mxu0
      %v2059 = vunpack.c.l.b16 %v1945
      %v2060 = vunpack.c.l.b16 %v1946
      %v2061 = vpack.c.b16 %v2060, %v2059
      %v2064 = vunpack.c.l.b16 %v1980
      %v2065 = vpack.c.b16 %v1990, %v2064
      %2067 = vmatpush.bf16.msra.mxu0 %v1992
      %2068 = vmatpush.bf16.msra.mxu0 %v1992
      %2069 = vmatpush.bf16.msra.mxu0 %v1992
      %2070 = vmatpush.bf16.msra.mxu0 %v1992
      %2071 = vmatpush.bf16.msra.mxu0 %v1992
      %2072 = vmatpush.bf16.msra.mxu0 %v1992
      %2073 = vmatpush.bf16.msra.mxu0 %v1992
      %2074 = vmatpush.bf16.msra.mxu0 %v2065
      %2075 = vmatmul.bf16.gmra.mxu0 %v2061
      %v2076 = vpop.f32.mrf.mxu0
      %v2077 = vadd.f32 0.0, %v2076
      %v2078 = vpop.f32.mrf.mxu0
      %v2079 = vadd.f32 0.0, %v2078
      %2080 = vdwg.mxu0
      %v2081 = vpack.c.bf16 %v2005, %v2005
      %v2082 = vpack.c.bf16 %v2007, %v2007
      %v2083 = vpack.c.bf16 %v2029, %v2029
      %v2084 = vpack.c.bf16 %v2031, %v2031
      %v2085 = vpack.c.bf16 %v2053, %v2053
      %v2086 = vpack.c.bf16 %v2055, %v2055
      %v2087 = vpack.c.bf16 %v2077, %v2077
      %v2088 = vpack.c.bf16 %v2079, %v2079
      %v2089 = vld [vmem:[%s9] sm:$0xf]
      %v2090 = vld [vmem:[%s10] sm:$0xff]
      %v2099 = vunpack.c.l.b16 %v2081
      %v2100 = vunpack.c.l.b16 %v2082
      %v2101 = vunpack.c.l.b16 %v2083
      %v2102 = vunpack.c.l.b16 %v2084
      %v2103 = vunpack.c.l.b16 %v2085
      %v2104 = vunpack.c.l.b16 %v2086
      %v2105 = vunpack.c.l.b16 %v2087
      %v2106 = vunpack.c.l.b16 %v2088
      %v2107 = vpack.c.b16 %v2100, %v2099
      %v2108 = vpack.c.b16 %v2102, %v2101
      %v2109 = vpack.c.b16 %v2104, %v2103
      %v2110 = vpack.c.b16 %v2106, %v2105
      %2116 = vset.pattern.permute.xlu0 0
      %2117 = vperm.xlu0 %2116, %v2090
      %v2118 = vpop.permute.xlu0 %2117
      %vm2120 = vcmask 392192
      %v2122 = vsel %vm2120, %v2089, 0
      %2124 = vmatpush.bf16.msra.mxu0 0
      %2125 = vmatpush.bf16.msra.mxu0 0
      %2126 = vmatpush.bf16.msra.mxu0 0
      %2127 = vmatpush.bf16.msra.mxu0 0
      %2128 = vmatpush.bf16.msra.mxu0 0
      %2129 = vmatpush.bf16.msra.mxu0 %v2108
      %2130 = vmatpush.bf16.msra.mxu0 %v2107
      %2131 = vmatpush.bf16.msra.mxu0 0
      %2132 = vmatmul.bf16.gmra.mxu0 %v2122
      %v2133 = vpop.f32.mrf.mxu0
      %v2134 = vadd.f32 %v2118, %v2133
      %v2135 = vpop.f32.mrf.mxu0
      %2136 = vdwg.mxu0
      %2137 = vmatpush.bf16.msra.mxu0 0
      %2138 = vmatpush.bf16.msra.mxu0 0
      %2139 = vmatpush.bf16.msra.mxu0 0
      %2140 = vmatpush.bf16.msra.mxu0 0
      %2141 = vmatpush.bf16.msra.mxu0 0
      %2142 = vmatpush.bf16.msra.mxu0 %v2109
      %2143 = vmatpush.bf16.msra.mxu0 %v2108
      %2144 = vmatpush.bf16.msra.mxu0 %v2107
      %2145 = vmatmul.bf16.gmra.mxu0 %v2122
      %v2146 = vpop.f32.mrf.mxu0
      %v2147 = vadd.f32 %v2118, %v2146
      %v2148 = vpop.f32.mrf.mxu0
      %2149 = vdwg.mxu0
      %2150 = vmatpush.bf16.msra.mxu0 0
      %2151 = vmatpush.bf16.msra.mxu0 0
      %2152 = vmatpush.bf16.msra.mxu0 0
      %2153 = vmatpush.bf16.msra.mxu0 0
      %2154 = vmatpush.bf16.msra.mxu0 0
      %2155 = vmatpush.bf16.msra.mxu0 %v2110
      %2156 = vmatpush.bf16.msra.mxu0 %v2109
      %2157 = vmatpush.bf16.msra.mxu0 %v2108
      %2158 = vmatmul.bf16.gmra.mxu0 %v2122
      %v2159 = vpop.f32.mrf.mxu0
      %v2160 = vadd.f32 %v2118, %v2159
      %v2161 = vpop.f32.mrf.mxu0
      %2162 = vdwg.mxu0
      %2163 = vmatpush.bf16.msra.mxu0 0
      %2164 = vmatpush.bf16.msra.mxu0 0
      %2165 = vmatpush.bf16.msra.mxu0 0
      %2166 = vmatpush.bf16.msra.mxu0 0
      %2167 = vmatpush.bf16.msra.mxu0 0
      %2168 = vmatpush.bf16.msra.mxu0 0
      %2169 = vmatpush.bf16.msra.mxu0 %v2110
      %2170 = vmatpush.bf16.msra.mxu0 %v2109
      %2171 = vmatmul.bf16.gmra.mxu0 %v2122
      %v2172 = vpop.f32.mrf.mxu0
      %v2173 = vadd.f32 %v2118, %v2172
      %v2174 = vpop.f32.mrf.mxu0
      %2175 = vdwg.mxu0
      %v2176 = vmax.f32 %v2134, 0.0
      %v2177 = vmax.f32 %v2147, 0.0
      %v2178 = vmax.f32 %v2160, 0.0
      %v2179 = vmax.f32 %v2173, 0.0
      %v2180 = vpack.c.bf16 %v2176, %v2176
      %v2181 = vpack.c.bf16 %v2177, %v2177
      %v2182 = vpack.c.bf16 %v2178, %v2178
      %v2183 = vpack.c.bf16 %v2179, %v2179
      %v2184 = vunpack.c.l.bf16 %v2180
      %v2185 = vunpack.c.l.bf16 %v2181
      %v2186 = vunpack.c.l.bf16 %v2182
      %v2187 = vunpack.c.l.bf16 %v2183
      %v2188 = vsel %vm1091, %v2184, 0.0
      %v2189 = vsel %vm1091, %v2185, 0.0
      %v2190 = vadd.f32 %v2188, %v2189
      %v2191 = vsel %vm1091, %v2186, 0.0
      %v2192 = vadd.f32 %v2190, %v2191
      %v2193 = vsel %vm1091, %v2187, 0.0
      %v2194 = vadd.f32 %v2192, %v2193
      %v2195 = vsel %vm1091, %v2194, 0.0
      %2196 = vadd.xlane.f32.xlu0 %v2195
      %v2197 = vpop.xlane.xlu0 %2196
      %v2198 = vmul.f32 %v2197, 0.041666668
      %2199 = vxpose.xlu0.b32.start [1/16] %v2198, 128
      %2200 = vxpose.xlu0.b32.cont [2/16] 0.0, 128
      %2201 = vxpose.xlu0.b32.cont [3/16] 0.0, 128
      %2202 = vxpose.xlu0.b32.cont [4/16] 0.0, 128
      %2203 = vxpose.xlu0.b32.cont [5/16] 0.0, 128
      %2204 = vxpose.xlu0.b32.cont [6/16] 0.0, 128
      %2205 = vxpose.xlu0.b32.cont [7/16] 0.0, 128
      %2206 = vxpose.xlu0.b32.cont [8/16] 0.0, 128
      %2207 = vxpose.xlu0.b32.cont [9/16] 0.0, 128
      %2208 = vxpose.xlu0.b32.cont [10/16] 0.0, 128
      %2209 = vxpose.xlu0.b32.cont [11/16] 0.0, 128
      %2210 = vxpose.xlu0.b32.cont [12/16] 0.0, 128
      %2211 = vxpose.xlu0.b32.cont [13/16] 0.0, 128
      %2212 = vxpose.xlu0.b32.cont [14/16] 0.0, 128
      %2213 = vxpose.xlu0.b32.cont [15/16] 0.0, 128
      %2214 = vxpose.xlu0.b32.end [16/16] 0.0, 128
      %v2215 = vpop.trf.xlu0
      %v2216 = vpop.trf.xlu0
      %v2217 = vpop.trf.xlu0
      %v2218 = vpop.trf.xlu0
      %v2219 = vpop.trf.xlu0
      %v2220 = vpop.trf.xlu0
      %v2221 = vpop.trf.xlu0
      %v2222 = vpop.trf.xlu0
      %v2223 = vpop.trf.xlu0
      %v2224 = vpop.trf.xlu0
      %v2225 = vpop.trf.xlu0
      %v2226 = vpop.trf.xlu0
      %v2227 = vpop.trf.xlu0
      %v2228 = vpop.trf.xlu0
      %v2229 = vpop.trf.xlu0
      %v2230 = vpop.trf.xlu0
      %vm2231 = vcmask 57344
      %2232 = vst.msk [vmem:[%s382] sm:$0x1] %vm2231, %v2215
      %p2233 = scmp.lt.s32.totalorder %s22, 1
      %s2234 = scalar_select %p2233, %s22, 1
      %s2235 = scalar_lea.vmem %s11, %s2234
      // Predicated region
      $region65: #{_lambda_.1} parent=63 // pred_check
        %p2236 = pneg %p276
      $region66: #{_lambda_.1} parent=63 // pred_check_branch
        %2238 = sbr.rel (%p2236) target = $region68
      $region67: #{_lambda_.1} parent=63 // pred_region
        _
      $region68: #{_lambda_.1} parent=63 // pred_fallthru
        _
    $region64: #{_lambda_.1} parent=5 // pred_fallthru
      _
    %p2239 = scmp.le.s32.totalorder 2, %s17
    // Predicated region
    $region69: #{_lambda_.1} parent=5 // pred_check
      %p2240 = pneg %p2239
    $region70: #{_lambda_.1} parent=5 // pred_check_branch
      %2242 = sbr.rel (%p2240) target = $region72
    $region71: #{_lambda_.1} parent=5 // pred_region
      %s2243 = ssub.s32 %s17, 2
      // Predicated region
      $region73: #{_lambda_.1} parent=71 // pred_check
        %p2244 = pneg %p282
      $region74: #{_lambda_.1} parent=71 // pred_check_branch
        %2246 = sbr.rel (%p2244) target = $region76
      $region75: #{_lambda_.1} parent=71 // pred_region
        %p2247 = scmp.lt.s32.totalorder %s23, 1
        %s2248 = scalar_select %p2247, %s23, 1
        %s2249 = scalar_lea.vmem %s11, %s2248
      $region76: #{_lambda_.1} parent=71 // pred_fallthru
        _
    $region72: #{_lambda_.1} parent=5 // pred_fallthru
      _
  $region6: #{_lambda_.1} parent=0 // loop_footer
    %s21 = sadd.s32 1, %s17
  $region7: #{_lambda_.1} parent=0 // loop_footer_branch
    %16 = sbr.rel target = $region3
  $region8: #{_lambda_.1} parent=0 // loop_exit
    _

</llo_original>
